<compile_context>
chip_gen: v7x
topology: tpu7x:2x2x1
jax: 0.10.0
libtpu: 0.0.40
codegen_flags: <defaults>
</compile_context>

<pallas_src>
import jax
import jax.numpy as jnp
from jax.experimental import pallas as pl
from jax.experimental.pallas import tpu as pltpu

# ---------------- problem sizes (small, consistent with the module) ----------
N = 2                              # batch
C_IN = 1                           # input channels
C = 32                             # conv output channels
KH, KW = 7, 5                      # conv kernel
H = 7                              # input height (=> conv output height 1)
W = 40                             # input width
PAD_W = 2                          # width padding (left/right)
POOL = 5                           # MaxPool2d kernel=(1,5), stride=5
W_OUT = W + 2 * PAD_W - KW + 1     # 40
P = W_OUT // POOL                  # pooled width = 8
D_HID = 32                         # "d_hid"
FLAT = C * 1 * P                   # flattened features into fc1 = 256
H_PAD = 8                          # kernel-height axis padded 7 -> 8 lanes
WP = W + 2 * PAD_W                 # 44 (padded width)
WP_PAD = 48                        # padded width rounded to sublane multiple
OUT_ROWS, OUT_LANES = 8, 128       # lane-dense padded output block


# ------------------------------- Pallas kernel --------------------------------
def convnet_kernel(xt_ref, wk_ref, bc_ref, w1_ref, b1_ref, out_ref,
                   conv_ref, act_ref):
    """Whole network in one grid step.

    xt_ref : (N, 48, 8)  f32   transposed padded input: xt[n, w, kh] = x_pad[n, kh, w]
    wk_ref : (5, 8, 32)  bf16  per-tap conv weight: wk[kw, kh, c] = Wconv[c, kh, kw]
    bc_ref : (1, 32)     f32   conv bias
    w1_ref : (8, 32, 32) bf16  fc1 weight: w1_3d[p, c, d] = W1[d, c*P + p]
    b1_ref : (1, 32)     f32   fc1 bias
    out_ref: (8, 128)    f32   lane-dense padded output (valid region [:N, :D_HID])
    conv_ref: (80, 32)   f32   scratch, conv output rows = n*40 + w
    act_ref : (16, 32)   f32   scratch, pooled activations rows = n*8 + p
    """
    # ---- Conv2d(1->32, (7,5), width pad 2): 5 shifted-window MXU matmuls per n.
    for n in range(N):
        acc = None
        for kw in range(KW):
            a = xt_ref[n, kw:kw + W_OUT, :].astype(jnp.bfloat16)          # (40, 8)
            t = jnp.dot(a, wk_ref[kw], preferred_element_type=jnp.float32)  # (40, 32)
            acc = t if acc is None else acc + t
        conv_ref[n * W_OUT:(n + 1) * W_OUT, :] = acc                      # rows n*40 + w

    # ---- MaxPool2d((1,5), stride 5): max of 5 sublane-strided views (rows n*8+p).
    pooled = conv_ref[pl.ds(0, N * P, stride=POOL), :]                    # (16, 32)
    for o in range(1, POOL):
        pooled = jnp.maximum(pooled, conv_ref[pl.ds(o, N * P, stride=POOL), :])

    # Conv bias + ReLU hoisted out of the max: max_o relu(s_o + b) = relu(max_o s_o + b).
    act_ref[...] = jnp.maximum(pooled + bc_ref[...], 0.0)                 # (16, 32)

    # TODO(synk): nn.Dropout() is identity in eval mode; training-mode random
    # masking/scaling is not implemented here.

    # ---- fc1: contract over (p, c) as 8 accumulated (2,32)@(32,32) matmuls.
    o_acc = jnp.zeros((N, D_HID), jnp.float32)
    for p in range(P):
        a_p = act_ref[pl.ds(p, N, stride=P), :].astype(jnp.bfloat16)      # (2, 32), rows = n
        o_acc = o_acc + jnp.dot(a_p, w1_ref[p], preferred_element_type=jnp.float32)

    # ---- "fc2" = nn.Sigmoid activation; write a lane-dense (8, 128) block.
    res = jax.nn.sigmoid(o_acc + b1_ref[...])                             # (2, 32)
    out_ref[...] = jnp.zeros_like(out_ref)
    out_ref[0:N, 0:D_HID] = res


# ------------------------------ JAX-side glue ---------------------------------
def _prep_input(x):
    """(N,1,H,W) NCHW -> width-padded, transposed (N, WP_PAD, H_PAD) f32."""
    xp = jnp.pad(x[:, 0], ((0, 0), (0, 0), (PAD_W, PAD_W)))               # (N, 7, 44)
    xt = jnp.transpose(xp, (0, 2, 1))                                      # (N, 44, 7)
    return jnp.pad(xt, ((0, 0), (0, WP_PAD - WP), (0, H_PAD - KH)))        # (N, 48, 8)


@jax.jit
def convnet_forward(x, wk, bc_row, w1_3d, b1_row):
    xt = _prep_input(x)
    cost = pl.CostEstimate(
        flops=2 * N * KW * W_OUT * H_PAD * C + 2 * N * FLAT * D_HID,
        transcendentals=N * D_HID,
        bytes_accessed=(4 * xt.size + 2 * wk.size + 4 * bc_row.size
                        + 2 * w1_3d.size + 4 * b1_row.size
                        + 4 * OUT_ROWS * OUT_LANES),
    )
    out = pl.pallas_call(
        convnet_kernel,
        out_shape=jax.ShapeDtypeStruct((OUT_ROWS, OUT_LANES), jnp.float32),
        grid=(1,),
        in_specs=[
            pl.BlockSpec((N, WP_PAD, H_PAD), lambda i: (0, 0, 0)),
            pl.BlockSpec((KW, H_PAD, C), lambda i: (0, 0, 0)),
            pl.BlockSpec((1, C), lambda i: (0, 0)),
            pl.BlockSpec((P, C, D_HID), lambda i: (0, 0, 0)),
            pl.BlockSpec((1, D_HID), lambda i: (0, 0)),
        ],
        out_specs=pl.BlockSpec((OUT_ROWS, OUT_LANES), lambda i: (0, 0)),
        scratch_shapes=[
            pltpu.VMEM((N * W_OUT, C), jnp.float32),   # conv output scratch
            pltpu.VMEM((N * P, C), jnp.float32),       # pooled activation scratch
        ],
        compiler_params=pltpu.CompilerParams(dimension_semantics=("arbitrary",)),
        cost_estimate=cost,
    )(xt, wk, bc_row, w1_3d, b1_row)
    return out[:N, :D_HID]


# ------------------------------ pure-JAX reference -----------------------------
def ref_forward(x, wc, bc, w1, b1):
    xp = jnp.pad(x, ((0, 0), (0, 0), (0, 0), (PAD_W, PAD_W)))
    conv = jax.lax.conv_general_dilated(
        xp, wc, window_strides=(1, 1), padding="VALID",
        dimension_numbers=("NCHW", "OIHW", "NCHW"))
    conv = conv + bc[None, :, None, None]
    conv = jnp.maximum(conv, 0.0)                                         # ReLU
    nb, cc, hh, ww = conv.shape
    pooled = conv[:, :, :, : (ww // POOL) * POOL].reshape(
        nb, cc, hh, ww // POOL, POOL).max(axis=-1)                        # MaxPool(1,5)/5
    flat = pooled.reshape(nb, -1)                                         # NCHW flatten
    out = flat @ w1.T + b1                                                # fc1
    return jax.nn.sigmoid(out)                                            # "fc2"


# ------------------------------------ main -------------------------------------
if __name__ == "__main__":
    key = jax.random.PRNGKey(0)
    kx, k1, k2, k3, k4 = jax.random.split(key, 5)

    x = jax.random.normal(kx, (N, C_IN, H, W), dtype=jnp.float32)

    # Deterministic synthetic parameters (PyTorch layouts).
    wc = jax.random.normal(k1, (C, C_IN, KH, KW), dtype=jnp.float32) * 0.1   # OIHW
    bc = jax.random.normal(k2, (C,), dtype=jnp.float32) * 0.1
    w1 = jax.random.normal(k3, (D_HID, FLAT), dtype=jnp.float32) * 0.05      # (out, in)
    b1 = jax.random.normal(k4, (D_HID,), dtype=jnp.float32) * 0.05

    # Kernel-friendly parameter layouts (precomputed once, outside the kernel).
    # wk[kw, kh, c] = wc[c, 0, kh, kw], kh zero-padded 7 -> 8; bf16 MXU operand.
    wk = jnp.pad(jnp.transpose(wc[:, 0], (2, 1, 0)),
                 ((0, 0), (0, H_PAD - KH), (0, 0))).astype(jnp.bfloat16)     # (5, 8, 32)
    bc_row = bc.reshape(1, C)                                                # (1, 32) f32
    # w1_3d[p, c, d] = w1[d, c*P + p]  (PyTorch NCHW flatten: feature = c*P + p)
    w1_3d = w1.reshape(D_HID, C, P).transpose(2, 1, 0).astype(jnp.bfloat16)  # (8, 32, 32)
    b1_row = b1.reshape(1, D_HID)                                            # (1, 32) f32

    out = jax.block_until_ready(convnet_forward(x, wk, bc_row, w1_3d, b1_row))

    ref = ref_forward(x, wc, bc, w1, b1)
    assert out.shape == (N, D_HID)
    # bf16 MXU operands -> loosened tolerance vs the f32 reference.
    assert jnp.allclose(out, ref, atol=1e-2, rtol=1e-2), (
        f"mismatch: max abs err {jnp.max(jnp.abs(out - ref))}")

    print("KERNEL_OK")
</pallas_src>

<mosaic_0001>
module attributes {stable_mosaic.version = 11 : i64} {
  func.func @convnet_kernel(%arg0: i32, %arg1: memref<2x48x8xf32, #tpu.memory_space<vmem>>, %arg2: memref<5x8x32xbf16, #tpu.memory_space<vmem>>, %arg3: memref<1x32xf32, #tpu.memory_space<vmem>>, %arg4: memref<8x32x32xbf16, #tpu.memory_space<vmem>>, %arg5: memref<1x32xf32, #tpu.memory_space<vmem>>, %arg6: memref<8x128xf32, #tpu.memory_space<vmem>>, %arg7: memref<80x32xf32, #tpu.memory_space<vmem>>, %arg8: memref<16x32xf32, #tpu.memory_space<vmem>>) attributes {dimension_semantics = [#tpu.dimension_semantics<arbitrary>], iteration_bounds = array<i64: 1>, scalar_prefetch = 0 : i64, scratch_operands = 2 : i64, tpu.core_type = #tpu.core_type<tc>, window_params = [{pipeline_mode = #tpu.pipeline_mode<synchronous>, transform_indices = @transform_0, window_bounds = array<i64: 2, 48, 8>}, {pipeline_mode = #tpu.pipeline_mode<synchronous>, transform_indices = @transform_1, window_bounds = array<i64: 5, 8, 32>}, {pipeline_mode = #tpu.pipeline_mode<synchronous>, transform_indices = @transform_2, window_bounds = array<i64: 1, 32>}, {pipeline_mode = #tpu.pipeline_mode<synchronous>, transform_indices = @transform_3, window_bounds = array<i64: 8, 32, 32>}, {pipeline_mode = #tpu.pipeline_mode<synchronous>, transform_indices = @transform_4, window_bounds = array<i64: 1, 32>}, {pipeline_mode = #tpu.pipeline_mode<synchronous>, transform_indices = @transform_5, window_bounds = array<i64: 8, 128>}]} {
    %c0 = arith.constant 0 : index
    %c0_0 = arith.constant 0 : index
    %c0_1 = arith.constant 0 : index
    %0 = vector.load %arg1[%c0, %c0_0, %c0_1] : memref<2x48x8xf32, #tpu.memory_space<vmem>>, vector<1x40x8xf32>
    %1 = vector.shape_cast %0 : vector<1x40x8xf32> to vector<40x8xf32>
    %2 = arith.truncf %1 : vector<40x8xf32> to vector<40x8xbf16>
    %c0_2 = arith.constant 0 : index
    %c0_3 = arith.constant 0 : index
    %c0_4 = arith.constant 0 : index
    %3 = vector.load %arg2[%c0_2, %c0_3, %c0_4] : memref<5x8x32xbf16, #tpu.memory_space<vmem>>, vector<1x8x32xbf16>
    %4 = vector.shape_cast %3 : vector<1x8x32xbf16> to vector<8x32xbf16>
    %cst = arith.constant dense<0.000000e+00> : vector<40x32xf32>
    %5 = tpu.matmul %2, %4, %cst {dimension_numbers = #tpu.dot_dimension_numbers<[1], [0], [0], [1], [0, 0, 1, 1], [], []>} : vector<40x8xbf16>, vector<8x32xbf16>, vector<40x32xf32> -> vector<40x32xf32>
    %c0_5 = arith.constant 0 : index
    %c1 = arith.constant 1 : index
    %c0_6 = arith.constant 0 : index
    %6 = vector.load %arg1[%c0_5, %c1, %c0_6] : memref<2x48x8xf32, #tpu.memory_space<vmem>>, vector<1x40x8xf32>
    %7 = vector.shape_cast %6 : vector<1x40x8xf32> to vector<40x8xf32>
    %8 = arith.truncf %7 : vector<40x8xf32> to vector<40x8xbf16>
    %c1_7 = arith.constant 1 : index
    %c0_8 = arith.constant 0 : index
    %c0_9 = arith.constant 0 : index
    %9 = vector.load %arg2[%c1_7, %c0_8, %c0_9] : memref<5x8x32xbf16, #tpu.memory_space<vmem>>, vector<1x8x32xbf16>
    %10 = vector.shape_cast %9 : vector<1x8x32xbf16> to vector<8x32xbf16>
    %cst_10 = arith.constant dense<0.000000e+00> : vector<40x32xf32>
    %11 = tpu.matmul %8, %10, %cst_10 {dimension_numbers = #tpu.dot_dimension_numbers<[1], [0], [0], [1], [0, 0, 1, 1], [], []>} : vector<40x8xbf16>, vector<8x32xbf16>, vector<40x32xf32> -> vector<40x32xf32>
    %12 = arith.addf %5, %11 : vector<40x32xf32>
    %c0_11 = arith.constant 0 : index
    %c2 = arith.constant 2 : index
    %c0_12 = arith.constant 0 : index
    %13 = vector.load %arg1[%c0_11, %c2, %c0_12] : memref<2x48x8xf32, #tpu.memory_space<vmem>>, vector<1x40x8xf32>
    %14 = vector.shape_cast %13 : vector<1x40x8xf32> to vector<40x8xf32>
    %15 = arith.truncf %14 : vector<40x8xf32> to vector<40x8xbf16>
    %c2_13 = arith.constant 2 : index
    %c0_14 = arith.constant 0 : index
    %c0_15 = arith.constant 0 : index
    %16 = vector.load %arg2[%c2_13, %c0_14, %c0_15] : memref<5x8x32xbf16, #tpu.memory_space<vmem>>, vector<1x8x32xbf16>
    %17 = vector.shape_cast %16 : vector<1x8x32xbf16> to vector<8x32xbf16>
    %cst_16 = arith.constant dense<0.000000e+00> : vector<40x32xf32>
    %18 = tpu.matmul %15, %17, %cst_16 {dimension_numbers = #tpu.dot_dimension_numbers<[1], [0], [0], [1], [0, 0, 1, 1], [], []>} : vector<40x8xbf16>, vector<8x32xbf16>, vector<40x32xf32> -> vector<40x32xf32>
    %19 = arith.addf %12, %18 : vector<40x32xf32>
    %c0_17 = arith.constant 0 : index
    %c3 = arith.constant 3 : index
    %c0_18 = arith.constant 0 : index
    %20 = vector.load %arg1[%c0_17, %c3, %c0_18] : memref<2x48x8xf32, #tpu.memory_space<vmem>>, vector<1x40x8xf32>
    %21 = vector.shape_cast %20 : vector<1x40x8xf32> to vector<40x8xf32>
    %22 = arith.truncf %21 : vector<40x8xf32> to vector<40x8xbf16>
    %c3_19 = arith.constant 3 : index
    %c0_20 = arith.constant 0 : index
    %c0_21 = arith.constant 0 : index
    %23 = vector.load %arg2[%c3_19, %c0_20, %c0_21] : memref<5x8x32xbf16, #tpu.memory_space<vmem>>, vector<1x8x32xbf16>
    %24 = vector.shape_cast %23 : vector<1x8x32xbf16> to vector<8x32xbf16>
    %cst_22 = arith.constant dense<0.000000e+00> : vector<40x32xf32>
    %25 = tpu.matmul %22, %24, %cst_22 {dimension_numbers = #tpu.dot_dimension_numbers<[1], [0], [0], [1], [0, 0, 1, 1], [], []>} : vector<40x8xbf16>, vector<8x32xbf16>, vector<40x32xf32> -> vector<40x32xf32>
    %26 = arith.addf %19, %25 : vector<40x32xf32>
    %c0_23 = arith.constant 0 : index
    %c4 = arith.constant 4 : index
    %c0_24 = arith.constant 0 : index
    %27 = vector.load %arg1[%c0_23, %c4, %c0_24] : memref<2x48x8xf32, #tpu.memory_space<vmem>>, vector<1x40x8xf32>
    %28 = vector.shape_cast %27 : vector<1x40x8xf32> to vector<40x8xf32>
    %29 = arith.truncf %28 : vector<40x8xf32> to vector<40x8xbf16>
    %c4_25 = arith.constant 4 : index
    %c0_26 = arith.constant 0 : index
    %c0_27 = arith.constant 0 : index
    %30 = vector.load %arg2[%c4_25, %c0_26, %c0_27] : memref<5x8x32xbf16, #tpu.memory_space<vmem>>, vector<1x8x32xbf16>
    %31 = vector.shape_cast %30 : vector<1x8x32xbf16> to vector<8x32xbf16>
    %cst_28 = arith.constant dense<0.000000e+00> : vector<40x32xf32>
    %32 = tpu.matmul %29, %31, %cst_28 {dimension_numbers = #tpu.dot_dimension_numbers<[1], [0], [0], [1], [0, 0, 1, 1], [], []>} : vector<40x8xbf16>, vector<8x32xbf16>, vector<40x32xf32> -> vector<40x32xf32>
    %33 = arith.addf %26, %32 : vector<40x32xf32>
    %c0_29 = arith.constant 0 : index
    %c0_30 = arith.constant 0 : index
    %34 = vector.load %arg7[%c0_29, %c0_30] : memref<80x32xf32, #tpu.memory_space<vmem>>, vector<40x32xf32>
    tpu.vector_store %arg7[%c0_29, %c0_30], %33 {strides = array<i32>} : memref<80x32xf32, #tpu.memory_space<vmem>>, vector<40x32xf32>,
    %c1_31 = arith.constant 1 : index
    %c0_32 = arith.constant 0 : index
    %c0_33 = arith.constant 0 : index
    %35 = vector.load %arg1[%c1_31, %c0_32, %c0_33] : memref<2x48x8xf32, #tpu.memory_space<vmem>>, vector<1x40x8xf32>
    %36 = vector.shape_cast %35 : vector<1x40x8xf32> to vector<40x8xf32>
    %37 = arith.truncf %36 : vector<40x8xf32> to vector<40x8xbf16>
    %c0_34 = arith.constant 0 : index
    %c0_35 = arith.constant 0 : index
    %c0_36 = arith.constant 0 : index
    %38 = vector.load %arg2[%c0_34, %c0_35, %c0_36] : memref<5x8x32xbf16, #tpu.memory_space<vmem>>, vector<1x8x32xbf16>
    %39 = vector.shape_cast %38 : vector<1x8x32xbf16> to vector<8x32xbf16>
    %cst_37 = arith.constant dense<0.000000e+00> : vector<40x32xf32>
    %40 = tpu.matmul %37, %39, %cst_37 {dimension_numbers = #tpu.dot_dimension_numbers<[1], [0], [0], [1], [0, 0, 1, 1], [], []>} : vector<40x8xbf16>, vector<8x32xbf16>, vector<40x32xf32> -> vector<40x32xf32>
    %c1_38 = arith.constant 1 : index
    %c1_39 = arith.constant 1 : index
    %c0_40 = arith.constant 0 : index
    %41 = vector.load %arg1[%c1_38, %c1_39, %c0_40] : memref<2x48x8xf32, #tpu.memory_space<vmem>>, vector<1x40x8xf32>
    %42 = vector.shape_cast %41 : vector<1x40x8xf32> to vector<40x8xf32>
    %43 = arith.truncf %42 : vector<40x8xf32> to vector<40x8xbf16>
    %c1_41 = arith.constant 1 : index
    %c0_42 = arith.constant 0 : index
    %c0_43 = arith.constant 0 : index
    %44 = vector.load %arg2[%c1_41, %c0_42, %c0_43] : memref<5x8x32xbf16, #tpu.memory_space<vmem>>, vector<1x8x32xbf16>
    %45 = vector.shape_cast %44 : vector<1x8x32xbf16> to vector<8x32xbf16>
    %cst_44 = arith.constant dense<0.000000e+00> : vector<40x32xf32>
    %46 = tpu.matmul %43, %45, %cst_44 {dimension_numbers = #tpu.dot_dimension_numbers<[1], [0], [0], [1], [0, 0, 1, 1], [], []>} : vector<40x8xbf16>, vector<8x32xbf16>, vector<40x32xf32> -> vector<40x32xf32>
    %47 = arith.addf %40, %46 : vector<40x32xf32>
    %c1_45 = arith.constant 1 : index
    %c2_46 = arith.constant 2 : index
    %c0_47 = arith.constant 0 : index
    %48 = vector.load %arg1[%c1_45, %c2_46, %c0_47] : memref<2x48x8xf32, #tpu.memory_space<vmem>>, vector<1x40x8xf32>
    %49 = vector.shape_cast %48 : vector<1x40x8xf32> to vector<40x8xf32>
    %50 = arith.truncf %49 : vector<40x8xf32> to vector<40x8xbf16>
    %c2_48 = arith.constant 2 : index
    %c0_49 = arith.constant 0 : index
    %c0_50 = arith.constant 0 : index
    %51 = vector.load %arg2[%c2_48, %c0_49, %c0_50] : memref<5x8x32xbf16, #tpu.memory_space<vmem>>, vector<1x8x32xbf16>
    %52 = vector.shape_cast %51 : vector<1x8x32xbf16> to vector<8x32xbf16>
    %cst_51 = arith.constant dense<0.000000e+00> : vector<40x32xf32>
    %53 = tpu.matmul %50, %52, %cst_51 {dimension_numbers = #tpu.dot_dimension_numbers<[1], [0], [0], [1], [0, 0, 1, 1], [], []>} : vector<40x8xbf16>, vector<8x32xbf16>, vector<40x32xf32> -> vector<40x32xf32>
    %54 = arith.addf %47, %53 : vector<40x32xf32>
    %c1_52 = arith.constant 1 : index
    %c3_53 = arith.constant 3 : index
    %c0_54 = arith.constant 0 : index
    %55 = vector.load %arg1[%c1_52, %c3_53, %c0_54] : memref<2x48x8xf32, #tpu.memory_space<vmem>>, vector<1x40x8xf32>
    %56 = vector.shape_cast %55 : vector<1x40x8xf32> to vector<40x8xf32>
    %57 = arith.truncf %56 : vector<40x8xf32> to vector<40x8xbf16>
    %c3_55 = arith.constant 3 : index
    %c0_56 = arith.constant 0 : index
    %c0_57 = arith.constant 0 : index
    %58 = vector.load %arg2[%c3_55, %c0_56, %c0_57] : memref<5x8x32xbf16, #tpu.memory_space<vmem>>, vector<1x8x32xbf16>
    %59 = vector.shape_cast %58 : vector<1x8x32xbf16> to vector<8x32xbf16>
    %cst_58 = arith.constant dense<0.000000e+00> : vector<40x32xf32>
    %60 = tpu.matmul %57, %59, %cst_58 {dimension_numbers = #tpu.dot_dimension_numbers<[1], [0], [0], [1], [0, 0, 1, 1], [], []>} : vector<40x8xbf16>, vector<8x32xbf16>, vector<40x32xf32> -> vector<40x32xf32>
    %61 = arith.addf %54, %60 : vector<40x32xf32>
    %c1_59 = arith.constant 1 : index
    %c4_60 = arith.constant 4 : index
    %c0_61 = arith.constant 0 : index
    %62 = vector.load %arg1[%c1_59, %c4_60, %c0_61] : memref<2x48x8xf32, #tpu.memory_space<vmem>>, vector<1x40x8xf32>
    %63 = vector.shape_cast %62 : vector<1x40x8xf32> to vector<40x8xf32>
    %64 = arith.truncf %63 : vector<40x8xf32> to vector<40x8xbf16>
    %c4_62 = arith.constant 4 : index
    %c0_63 = arith.constant 0 : index
    %c0_64 = arith.constant 0 : index
    %65 = vector.load %arg2[%c4_62, %c0_63, %c0_64] : memref<5x8x32xbf16, #tpu.memory_space<vmem>>, vector<1x8x32xbf16>
    %66 = vector.shape_cast %65 : vector<1x8x32xbf16> to vector<8x32xbf16>
    %cst_65 = arith.constant dense<0.000000e+00> : vector<40x32xf32>
    %67 = tpu.matmul %64, %66, %cst_65 {dimension_numbers = #tpu.dot_dimension_numbers<[1], [0], [0], [1], [0, 0, 1, 1], [], []>} : vector<40x8xbf16>, vector<8x32xbf16>, vector<40x32xf32> -> vector<40x32xf32>
    %68 = arith.addf %61, %67 : vector<40x32xf32>
    %c40 = arith.constant 40 : index
    %c0_66 = arith.constant 0 : index
    %69 = vector.load %arg7[%c40, %c0_66] : memref<80x32xf32, #tpu.memory_space<vmem>>, vector<40x32xf32>
    tpu.vector_store %arg7[%c40, %c0_66], %68 {strides = array<i32>} : memref<80x32xf32, #tpu.memory_space<vmem>>, vector<40x32xf32>,
    %c0_67 = arith.constant 0 : index
    %c0_68 = arith.constant 0 : index
    %70 = tpu.strided_load %arg7[%c0_67, %c0_68] {strides = array<i32: 5, 1>} : memref<80x32xf32, #tpu.memory_space<vmem>>, vector<16x32xf32>
    %c1_69 = arith.constant 1 : index
    %c0_70 = arith.constant 0 : index
    %71 = tpu.strided_load %arg7[%c1_69, %c0_70] {strides = array<i32: 5, 1>} : memref<80x32xf32, #tpu.memory_space<vmem>>, vector<16x32xf32>
    %72 = arith.maximumf %70, %71 : vector<16x32xf32>
    %c2_71 = arith.constant 2 : index
    %c0_72 = arith.constant 0 : index
    %73 = tpu.strided_load %arg7[%c2_71, %c0_72] {strides = array<i32: 5, 1>} : memref<80x32xf32, #tpu.memory_space<vmem>>, vector<16x32xf32>
    %74 = arith.maximumf %72, %73 : vector<16x32xf32>
    %c3_73 = arith.constant 3 : index
    %c0_74 = arith.constant 0 : index
    %75 = tpu.strided_load %arg7[%c3_73, %c0_74] {strides = array<i32: 5, 1>} : memref<80x32xf32, #tpu.memory_space<vmem>>, vector<16x32xf32>
    %76 = arith.maximumf %74, %75 : vector<16x32xf32>
    %c4_75 = arith.constant 4 : index
    %c0_76 = arith.constant 0 : index
    %77 = tpu.strided_load %arg7[%c4_75, %c0_76] {strides = array<i32: 5, 1>} : memref<80x32xf32, #tpu.memory_space<vmem>>, vector<16x32xf32>
    %78 = arith.maximumf %76, %77 : vector<16x32xf32>
    %c0_77 = arith.constant 0 : index
    %c0_78 = arith.constant 0 : index
    %79 = vector.load %arg3[%c0_77, %c0_78] : memref<1x32xf32, #tpu.memory_space<vmem>>, vector<1x32xf32>
    %80 = vector.broadcast %79 : vector<1x32xf32> to vector<16x32xf32>
    %81 = arith.addf %78, %80 : vector<16x32xf32>
    %cst_79 = arith.constant 0.000000e+00 : f32
    %82 = vector.broadcast %cst_79 : f32 to vector<16x32xf32>
    %83 = arith.maximumf %81, %82 : vector<16x32xf32>
    %c0_80 = arith.constant 0 : index
    %c0_81 = arith.constant 0 : index
    %84 = vector.load %arg8[%c0_80, %c0_81] : memref<16x32xf32, #tpu.memory_space<vmem>>, vector<16x32xf32>
    tpu.vector_store %arg8[%c0_80, %c0_81], %83 {strides = array<i32>} : memref<16x32xf32, #tpu.memory_space<vmem>>, vector<16x32xf32>,
    %cst_82 = arith.constant 0.000000e+00 : f32
    %85 = vector.broadcast %cst_82 : f32 to vector<2x32xf32>
    %c0_83 = arith.constant 0 : index
    %c0_84 = arith.constant 0 : index
    %86 = tpu.strided_load %arg8[%c0_83, %c0_84] {strides = array<i32: 8, 1>} : memref<16x32xf32, #tpu.memory_space<vmem>>, vector<2x32xf32>
    %87 = arith.truncf %86 : vector<2x32xf32> to vector<2x32xbf16>
    %c0_85 = arith.constant 0 : index
    %c0_86 = arith.constant 0 : index
    %c0_87 = arith.constant 0 : index
    %88 = vector.load %arg4[%c0_85, %c0_86, %c0_87] : memref<8x32x32xbf16, #tpu.memory_space<vmem>>, vector<1x32x32xbf16>
    %89 = vector.shape_cast %88 : vector<1x32x32xbf16> to vector<32x32xbf16>
    %cst_88 = arith.constant dense<0.000000e+00> : vector<2x32xf32>
    %90 = tpu.matmul %87, %89, %cst_88 {dimension_numbers = #tpu.dot_dimension_numbers<[1], [0], [0], [1], [0, 0, 1, 1], [], []>} : vector<2x32xbf16>, vector<32x32xbf16>, vector<2x32xf32> -> vector<2x32xf32>
    %91 = arith.addf %85, %90 : vector<2x32xf32>
    %c1_89 = arith.constant 1 : index
    %c0_90 = arith.constant 0 : index
    %92 = tpu.strided_load %arg8[%c1_89, %c0_90] {strides = array<i32: 8, 1>} : memref<16x32xf32, #tpu.memory_space<vmem>>, vector<2x32xf32>
    %93 = arith.truncf %92 : vector<2x32xf32> to vector<2x32xbf16>
    %c1_91 = arith.constant 1 : index
    %c0_92 = arith.constant 0 : index
    %c0_93 = arith.constant 0 : index
    %94 = vector.load %arg4[%c1_91, %c0_92, %c0_93] : memref<8x32x32xbf16, #tpu.memory_space<vmem>>, vector<1x32x32xbf16>
    %95 = vector.shape_cast %94 : vector<1x32x32xbf16> to vector<32x32xbf16>
    %cst_94 = arith.constant dense<0.000000e+00> : vector<2x32xf32>
    %96 = tpu.matmul %93, %95, %cst_94 {dimension_numbers = #tpu.dot_dimension_numbers<[1], [0], [0], [1], [0, 0, 1, 1], [], []>} : vector<2x32xbf16>, vector<32x32xbf16>, vector<2x32xf32> -> vector<2x32xf32>
    %97 = arith.addf %91, %96 : vector<2x32xf32>
    %c2_95 = arith.constant 2 : index
    %c0_96 = arith.constant 0 : index
    %98 = tpu.strided_load %arg8[%c2_95, %c0_96] {strides = array<i32: 8, 1>} : memref<16x32xf32, #tpu.memory_space<vmem>>, vector<2x32xf32>
    %99 = arith.truncf %98 : vector<2x32xf32> to vector<2x32xbf16>
    %c2_97 = arith.constant 2 : index
    %c0_98 = arith.constant 0 : index
    %c0_99 = arith.constant 0 : index
    %100 = vector.load %arg4[%c2_97, %c0_98, %c0_99] : memref<8x32x32xbf16, #tpu.memory_space<vmem>>, vector<1x32x32xbf16>
    %101 = vector.shape_cast %100 : vector<1x32x32xbf16> to vector<32x32xbf16>
    %cst_100 = arith.constant dense<0.000000e+00> : vector<2x32xf32>
    %102 = tpu.matmul %99, %101, %cst_100 {dimension_numbers = #tpu.dot_dimension_numbers<[1], [0], [0], [1], [0, 0, 1, 1], [], []>} : vector<2x32xbf16>, vector<32x32xbf16>, vector<2x32xf32> -> vector<2x32xf32>
    %103 = arith.addf %97, %102 : vector<2x32xf32>
    %c3_101 = arith.constant 3 : index
    %c0_102 = arith.constant 0 : index
    %104 = tpu.strided_load %arg8[%c3_101, %c0_102] {strides = array<i32: 8, 1>} : memref<16x32xf32, #tpu.memory_space<vmem>>, vector<2x32xf32>
    %105 = arith.truncf %104 : vector<2x32xf32> to vector<2x32xbf16>
    %c3_103 = arith.constant 3 : index
    %c0_104 = arith.constant 0 : index
    %c0_105 = arith.constant 0 : index
    %106 = vector.load %arg4[%c3_103, %c0_104, %c0_105] : memref<8x32x32xbf16, #tpu.memory_space<vmem>>, vector<1x32x32xbf16>
    %107 = vector.shape_cast %106 : vector<1x32x32xbf16> to vector<32x32xbf16>
    %cst_106 = arith.constant dense<0.000000e+00> : vector<2x32xf32>
    %108 = tpu.matmul %105, %107, %cst_106 {dimension_numbers = #tpu.dot_dimension_numbers<[1], [0], [0], [1], [0, 0, 1, 1], [], []>} : vector<2x32xbf16>, vector<32x32xbf16>, vector<2x32xf32> -> vector<2x32xf32>
    %109 = arith.addf %103, %108 : vector<2x32xf32>
    %c4_107 = arith.constant 4 : index
    %c0_108 = arith.constant 0 : index
    %110 = tpu.strided_load %arg8[%c4_107, %c0_108] {strides = array<i32: 8, 1>} : memref<16x32xf32, #tpu.memory_space<vmem>>, vector<2x32xf32>
    %111 = arith.truncf %110 : vector<2x32xf32> to vector<2x32xbf16>
    %c4_109 = arith.constant 4 : index
    %c0_110 = arith.constant 0 : index
    %c0_111 = arith.constant 0 : index
    %112 = vector.load %arg4[%c4_109, %c0_110, %c0_111] : memref<8x32x32xbf16, #tpu.memory_space<vmem>>, vector<1x32x32xbf16>
    %113 = vector.shape_cast %112 : vector<1x32x32xbf16> to vector<32x32xbf16>
    %cst_112 = arith.constant dense<0.000000e+00> : vector<2x32xf32>
    %114 = tpu.matmul %111, %113, %cst_112 {dimension_numbers = #tpu.dot_dimension_numbers<[1], [0], [0], [1], [0, 0, 1, 1], [], []>} : vector<2x32xbf16>, vector<32x32xbf16>, vector<2x32xf32> -> vector<2x32xf32>
    %115 = arith.addf %109, %114 : vector<2x32xf32>
    %c5 = arith.constant 5 : index
    %c0_113 = arith.constant 0 : index
    %116 = tpu.strided_load %arg8[%c5, %c0_113] {strides = array<i32: 8, 1>} : memref<16x32xf32, #tpu.memory_space<vmem>>, vector<2x32xf32>
    %117 = arith.truncf %116 : vector<2x32xf32> to vector<2x32xbf16>
    %c5_114 = arith.constant 5 : index
    %c0_115 = arith.constant 0 : index
    %c0_116 = arith.constant 0 : index
    %118 = vector.load %arg4[%c5_114, %c0_115, %c0_116] : memref<8x32x32xbf16, #tpu.memory_space<vmem>>, vector<1x32x32xbf16>
    %119 = vector.shape_cast %118 : vector<1x32x32xbf16> to vector<32x32xbf16>
    %cst_117 = arith.constant dense<0.000000e+00> : vector<2x32xf32>
    %120 = tpu.matmul %117, %119, %cst_117 {dimension_numbers = #tpu.dot_dimension_numbers<[1], [0], [0], [1], [0, 0, 1, 1], [], []>} : vector<2x32xbf16>, vector<32x32xbf16>, vector<2x32xf32> -> vector<2x32xf32>
    %121 = arith.addf %115, %120 : vector<2x32xf32>
    %c6 = arith.constant 6 : index
    %c0_118 = arith.constant 0 : index
    %122 = tpu.strided_load %arg8[%c6, %c0_118] {strides = array<i32: 8, 1>} : memref<16x32xf32, #tpu.memory_space<vmem>>, vector<2x32xf32>
    %123 = arith.truncf %122 : vector<2x32xf32> to vector<2x32xbf16>
    %c6_119 = arith.constant 6 : index
    %c0_120 = arith.constant 0 : index
    %c0_121 = arith.constant 0 : index
    %124 = vector.load %arg4[%c6_119, %c0_120, %c0_121] : memref<8x32x32xbf16, #tpu.memory_space<vmem>>, vector<1x32x32xbf16>
    %125 = vector.shape_cast %124 : vector<1x32x32xbf16> to vector<32x32xbf16>
    %cst_122 = arith.constant dense<0.000000e+00> : vector<2x32xf32>
    %126 = tpu.matmul %123, %125, %cst_122 {dimension_numbers = #tpu.dot_dimension_numbers<[1], [0], [0], [1], [0, 0, 1, 1], [], []>} : vector<2x32xbf16>, vector<32x32xbf16>, vector<2x32xf32> -> vector<2x32xf32>
    %127 = arith.addf %121, %126 : vector<2x32xf32>
    %c7 = arith.constant 7 : index
    %c0_123 = arith.constant 0 : index
    %128 = tpu.strided_load %arg8[%c7, %c0_123] {strides = array<i32: 8, 1>} : memref<16x32xf32, #tpu.memory_space<vmem>>, vector<2x32xf32>
    %129 = arith.truncf %128 : vector<2x32xf32> to vector<2x32xbf16>
    %c7_124 = arith.constant 7 : index
    %c0_125 = arith.constant 0 : index
    %c0_126 = arith.constant 0 : index
    %130 = vector.load %arg4[%c7_124, %c0_125, %c0_126] : memref<8x32x32xbf16, #tpu.memory_space<vmem>>, vector<1x32x32xbf16>
    %131 = vector.shape_cast %130 : vector<1x32x32xbf16> to vector<32x32xbf16>
    %cst_127 = arith.constant dense<0.000000e+00> : vector<2x32xf32>
    %132 = tpu.matmul %129, %131, %cst_127 {dimension_numbers = #tpu.dot_dimension_numbers<[1], [0], [0], [1], [0, 0, 1, 1], [], []>} : vector<2x32xbf16>, vector<32x32xbf16>, vector<2x32xf32> -> vector<2x32xf32>
    %133 = arith.addf %127, %132 : vector<2x32xf32>
    %c0_128 = arith.constant 0 : index
    %c0_129 = arith.constant 0 : index
    %134 = vector.load %arg5[%c0_128, %c0_129] : memref<1x32xf32, #tpu.memory_space<vmem>>, vector<1x32xf32>
    %135 = vector.broadcast %134 : vector<1x32xf32> to vector<2x32xf32>
    %136 = arith.addf %133, %135 : vector<2x32xf32>
    %137 = arith.negf %136 : vector<2x32xf32>
    %138 = math.exp %137 : vector<2x32xf32>
    %cst_130 = arith.constant 1.000000e+00 : f32
    %139 = vector.broadcast %cst_130 : f32 to vector<2x32xf32>
    %140 = arith.addf %139, %138 : vector<2x32xf32>
    %141 = arith.divf %139, %140 : vector<2x32xf32>
    %cst_131 = arith.constant 0.000000e+00 : f32
    %142 = vector.broadcast %cst_131 : f32 to vector<8x128xf32>
    %c0_132 = arith.constant 0 : index
    %c0_133 = arith.constant 0 : index
    %143 = vector.load %arg6[%c0_132, %c0_133] : memref<8x128xf32, #tpu.memory_space<vmem>>, vector<8x128xf32>
    tpu.vector_store %arg6[%c0_132, %c0_133], %142 {strides = array<i32>} : memref<8x128xf32, #tpu.memory_space<vmem>>, vector<8x128xf32>,
    %c0_134 = arith.constant 0 : index
    %c0_135 = arith.constant 0 : index
    %144 = vector.load %arg6[%c0_134, %c0_135] : memref<8x128xf32, #tpu.memory_space<vmem>>, vector<2x32xf32>
    tpu.vector_store %arg6[%c0_134, %c0_135], %141 {strides = array<i32>} : memref<8x128xf32, #tpu.memory_space<vmem>>, vector<2x32xf32>,
    return
  }
  func.func @transform_0(%arg0: i32) -> (i32, i32, i32) {
    %c0_i32 = arith.constant 0 : i32
    %c0_i32_0 = arith.constant 0 : i32
    %c0_i32_1 = arith.constant 0 : i32
    %c0_i32_2 = arith.constant 0 : i32
    return %c0_i32, %c0_i32_0, %c0_i32_1 : i32, i32, i32
  }
  func.func @transform_1(%arg0: i32) -> (i32, i32, i32) {
    %c0_i32 = arith.constant 0 : i32
    %c0_i32_0 = arith.constant 0 : i32
    %c0_i32_1 = arith.constant 0 : i32
    %c0_i32_2 = arith.constant 0 : i32
    return %c0_i32, %c0_i32_0, %c0_i32_1 : i32, i32, i32
  }
  func.func @transform_2(%arg0: i32) -> (i32, i32) {
    %c0_i32 = arith.constant 0 : i32
    %c0_i32_0 = arith.constant 0 : i32
    %c0_i32_1 = arith.constant 0 : i32
    return %c0_i32, %c0_i32_0 : i32, i32
  }
  func.func @transform_3(%arg0: i32) -> (i32, i32, i32) {
    %c0_i32 = arith.constant 0 : i32
    %c0_i32_0 = arith.constant 0 : i32
    %c0_i32_1 = arith.constant 0 : i32
    %c0_i32_2 = arith.constant 0 : i32
    return %c0_i32, %c0_i32_0, %c0_i32_1 : i32, i32, i32
  }
  func.func @transform_4(%arg0: i32) -> (i32, i32) {
    %c0_i32 = arith.constant 0 : i32
    %c0_i32_0 = arith.constant 0 : i32
    %c0_i32_1 = arith.constant 0 : i32
    return %c0_i32, %c0_i32_0 : i32, i32
  }
  func.func @transform_5(%arg0: i32) -> (i32, i32) {
    %c0_i32 = arith.constant 0 : i32
    %c0_i32_0 = arith.constant 0 : i32
    %c0_i32_1 = arith.constant 0 : i32
    return %c0_i32, %c0_i32_0 : i32, i32
  }
}

</mosaic_0001>

<llo_original>
// kernel: convnet_forward.1
$region0: #{convnet_forward.1}
  #allocation0 [shape = 'u32[]', space=smem, size = 0x4, offset = 0x4, fixed_abs, tag = 'smem constant byte address 0x4 - core index']
  #allocation1 [shape = 'u32[144,128]{1,0:T(1,128)}', space=vmem, size = 0x12000, scoped, tag = 'internal scratch']
  #allocation2 [shape = 'f32[80,32]{1,0:T(8,128)}', space=vmem, size = 0xa000, scoped, tag = 'scratch operand']
  #allocation3 [shape = 'f32[16,32]{1,0:T(8,128)}', space=vmem, size = 0x2000, scoped, tag = 'scratch operand']
  %s0 = inlined_call_operand.vmem [shape: f32[2,48,8], index: 0, kind: input, shape index: {}]
  %s1 = inlined_call_operand.vmem [shape: bf16[5,8,32], index: 1, kind: input, shape index: {}]
  %s2 = inlined_call_operand.vmem [shape: f32[1,32], index: 2, kind: input, shape index: {}]
  %s3 = inlined_call_operand.vmem [shape: bf16[8,32,32], index: 3, kind: input, shape index: {}]
  %s4 = inlined_call_operand.vmem [shape: f32[1,32], index: 4, kind: input, shape index: {}]
  %s5 = inlined_call_operand.vmem [shape: f32[8,128], index: 5, kind: output, shape index: {}]
  %s6 = sld [smem:[#allocation0]]
  $region30: #{convnet_forward.1} parent=0
    _
  %s8 = ssub.s32 1, %s6
  %s9 = scalar_select 0, %s8, %s6
  // Predicated region
  $region2: #{convnet_forward.1} parent=0 // pred_check
    _
  $region3: #{convnet_forward.1} parent=0 // pred_check_branch
    %11 = sbr.rel (0) target = $region5
  $region4: #{convnet_forward.1} parent=0 // pred_region
    _
  $region5: #{convnet_forward.1} parent=0 // pred_fallthru
    _
  // Predicated region
  $region6: #{convnet_forward.1} parent=0 // pred_check
    _
  $region7: #{convnet_forward.1} parent=0 // pred_check_branch
    %13 = sbr.rel (0) target = $region9
  $region8: #{convnet_forward.1} parent=0 // pred_region
    _
  $region9: #{convnet_forward.1} parent=0 // pred_fallthru
    _
  // Predicated region
  $region10: #{convnet_forward.1} parent=0 // pred_check
    _
  $region11: #{convnet_forward.1} parent=0 // pred_check_branch
    %15 = sbr.rel (0) target = $region13
  $region12: #{convnet_forward.1} parent=0 // pred_region
    _
  $region13: #{convnet_forward.1} parent=0 // pred_fallthru
    _
  // Predicated region
  $region14: #{convnet_forward.1} parent=0 // pred_check
    _
  $region15: #{convnet_forward.1} parent=0 // pred_check_branch
    %17 = sbr.rel (0) target = $region17
  $region16: #{convnet_forward.1} parent=0 // pred_region
    _
  $region17: #{convnet_forward.1} parent=0 // pred_fallthru
    _
  // Predicated region
  $region18: #{convnet_forward.1} parent=0 // pred_check
    _
  $region19: #{convnet_forward.1} parent=0 // pred_check_branch
    %19 = sbr.rel (0) target = $region21
  $region20: #{convnet_forward.1} parent=0 // pred_region
    _
  $region21: #{convnet_forward.1} parent=0 // pred_fallthru
    _
  %v21 = vld [vmem:[%s0] sm:$0xff]
  %v22 = vld [vmem:[%s0 + $0x8] sm:$0xff]
  %v23 = vld [vmem:[%s0 + $0x10] sm:$0xff]
  %v24 = vld [vmem:[%s0 + $0x18] sm:$0xff]
  %v25 = vld [vmem:[%s0 + $0x20] sm:$0xff]
  %v26 = vpack.c.bf16 %v22, %v21
  %v27 = vpack.c.bf16 %v24, %v23
  %v28 = vpack.c.bf16 %v25, %v25
  %v29 = vld [vmem:[%s1] sm:$0xf]
  %v30 = vld [vmem:[%s0 + $0x1] sm:$0xff]
  %v31 = vld [vmem:[%s0 + $0x9] sm:$0xff]
  %v32 = vld [vmem:[%s0 + $0x11] sm:$0xff]
  %v33 = vld [vmem:[%s0 + $0x19] sm:$0xff]
  %v34 = vld [vmem:[%s0 + $0x21] sm:$0xff]
  %v35 = vpack.c.bf16 %v31, %v30
  %v36 = vpack.c.bf16 %v33, %v32
  %v37 = vpack.c.bf16 %v34, %v34
  %s38 = scalar_lea.vmem %s1, 4
  %v39 = vld [vmem:[%s38] sm:$0xf]
  %vm40 = vcmask 64512
  %v42 = vsel %vm40, %v35, 0
  %v45 = vsel %vm40, %v36, 0
  %v48 = vsel %vm40, %v37, 0
  %vm50 = vcmask 1043456
  %v52 = vsel %vm50, %v39, 0
  %54 = vmatprep.subr.bf16.mxu0 0
  %55 = vmatpush1.bf16.msra.mxu0 %v52
  %56 = vmatprep.subr.bf16.mxu0 0
  %57 = vmatpush1.bf16.msra.mxu0 0
  %58 = vmatprep.subr.bf16.mxu0 0
  %59 = vmatpush1.bf16.msra.mxu0 0
  %60 = vmatprep.subr.bf16.mxu0 0
  %61 = vmatpush1.bf16.msra.mxu0 0
  %62 = vmatprep.subr.bf16.mxu0 0
  %63 = vmatpush1.bf16.msra.mxu0 0
  %64 = vmatprep.subr.bf16.mxu0 0
  %65 = vmatpush1.bf16.msra.mxu0 0
  %66 = vmatprep.subr.bf16.mxu0 0
  %67 = vmatpush1.bf16.msra.mxu0 0
  %68 = vmatprep.subr.bf16.mxu0 0
  %69 = vmatpush1.bf16.msra.mxu0 0
  %70 = vmatprep.subr.bf16.mxu0 0
  %71 = vmatpush1.bf16.msra.mxu0 0
  %72 = vmatprep.subr.bf16.mxu0 0
  %73 = vmatpush1.bf16.msra.mxu0 0
  %74 = vmatprep.subr.bf16.mxu0 0
  %75 = vmatpush1.bf16.msra.mxu0 0
  %76 = vmatprep.subr.bf16.mxu0 0
  %77 = vmatpush1.bf16.msra.mxu0 0
  %78 = vmatprep.subr.bf16.mxu0 0
  %79 = vmatpush1.bf16.msra.mxu0 0
  %80 = vmatprep.subr.bf16.mxu0 0
  %81 = vmatpush1.bf16.msra.mxu0 0
  %82 = vmatprep.subr.bf16.mxu0 0
  %83 = vmatpush1.bf16.msra.mxu0 0
  %84 = vmatprep.subr.bf16.mxu0 0
  %85 = vmatpush1.bf16.msra.mxu0 0
  %86 = vmatprep.mubr.bf16.mxu0 0
  %87 = vmatmul.mubr.bf16.gmra.mrb[0].mxu0 %v42
  %v88 = vpop.f32.mrb[0].mxu0
  %v89 = vadd.f32 0.0, %v88
  %v90 = vpop.f32.mrb[0].mxu0
  %v91 = vpop.f32.mrb[0].mxu0
  %v92 = vadd.f32 0.0, %v91
  %v93 = vpop.f32.mrb[0].mxu0
  %94 = vmatprep.mubr.bf16.mxu0 0
  %95 = vmatmul.mubr.bf16.gmra.mrb[0].mxu0 %v45
  %v96 = vpop.f32.mrb[0].mxu0
  %v97 = vadd.f32 0.0, %v96
  %v98 = vpop.f32.mrb[0].mxu0
  %v99 = vpop.f32.mrb[0].mxu0
  %v100 = vadd.f32 0.0, %v99
  %v101 = vpop.f32.mrb[0].mxu0
  %102 = vmatprep.mubr.bf16.mxu0 0
  %103 = vmatmul.mubr.bf16.gmra.mrb[0].mxu0 %v48
  %v104 = vpop.f32.mrb[0].mxu0
  %v105 = vadd.f32 0.0, %v104
  %v106 = vpop.f32.mrb[0].mxu0
  %v107 = vpop.f32.mrb[0].mxu0
  %v108 = vpop.f32.mrb[0].mxu0
  %109 = vdwg.mxu0
  %v111 = vsel %vm40, %v26, 0
  %v114 = vsel %vm40, %v27, 0
  %v117 = vsel %vm40, %v28, 0
  %v120 = vsel %vm50, %v29, 0
  %122 = vmatprep.subr.bf16.mxu0 0
  %123 = vmatpush1.bf16.msra.mxu0 %v120
  %124 = vmatprep.subr.bf16.mxu0 0
  %125 = vmatpush1.bf16.msra.mxu0 0
  %126 = vmatprep.subr.bf16.mxu0 0
  %127 = vmatpush1.bf16.msra.mxu0 0
  %128 = vmatprep.subr.bf16.mxu0 0
  %129 = vmatpush1.bf16.msra.mxu0 0
  %130 = vmatprep.subr.bf16.mxu0 0
  %131 = vmatpush1.bf16.msra.mxu0 0
  %132 = vmatprep.subr.bf16.mxu0 0
  %133 = vmatpush1.bf16.msra.mxu0 0
  %134 = vmatprep.subr.bf16.mxu0 0
  %135 = vmatpush1.bf16.msra.mxu0 0
  %136 = vmatprep.subr.bf16.mxu0 0
  %137 = vmatpush1.bf16.msra.mxu0 0
  %138 = vmatprep.subr.bf16.mxu0 0
  %139 = vmatpush1.bf16.msra.mxu0 0
  %140 = vmatprep.subr.bf16.mxu0 0
  %141 = vmatpush1.bf16.msra.mxu0 0
  %142 = vmatprep.subr.bf16.mxu0 0
  %143 = vmatpush1.bf16.msra.mxu0 0
  %144 = vmatprep.subr.bf16.mxu0 0
  %145 = vmatpush1.bf16.msra.mxu0 0
  %146 = vmatprep.subr.bf16.mxu0 0
  %147 = vmatpush1.bf16.msra.mxu0 0
  %148 = vmatprep.subr.bf16.mxu0 0
  %149 = vmatpush1.bf16.msra.mxu0 0
  %150 = vmatprep.subr.bf16.mxu0 0
  %151 = vmatpush1.bf16.msra.mxu0 0
  %152 = vmatprep.subr.bf16.mxu0 0
  %153 = vmatpush1.bf16.msra.mxu0 0
  %154 = vmatprep.mubr.bf16.mxu0 0
  %155 = vmatmul.mubr.bf16.gmra.mrb[0].mxu0 %v111
  %v156 = vpop.f32.mrb[0].mxu0
  %v157 = vadd.f32 %v89, %v156
  %v158 = vpop.f32.mrb[0].mxu0
  %v159 = vpop.f32.mrb[0].mxu0
  %v160 = vadd.f32 %v92, %v159
  %v161 = vpop.f32.mrb[0].mxu0
  %162 = vmatprep.mubr.bf16.mxu0 0
  %163 = vmatmul.mubr.bf16.gmra.mrb[0].mxu0 %v114
  %v164 = vpop.f32.mrb[0].mxu0
  %v165 = vadd.f32 %v97, %v164
  %v166 = vpop.f32.mrb[0].mxu0
  %v167 = vpop.f32.mrb[0].mxu0
  %v168 = vadd.f32 %v100, %v167
  %v169 = vpop.f32.mrb[0].mxu0
  %170 = vmatprep.mubr.bf16.mxu0 0
  %171 = vmatmul.mubr.bf16.gmra.mrb[0].mxu0 %v117
  %v172 = vpop.f32.mrb[0].mxu0
  %v173 = vadd.f32 %v105, %v172
  %v174 = vpop.f32.mrb[0].mxu0
  %v175 = vpop.f32.mrb[0].mxu0
  %v176 = vpop.f32.mrb[0].mxu0
  %177 = vdwg.mxu0
  %v178 = vld [vmem:[%s0 + $0x2] sm:$0xff]
  %v179 = vld [vmem:[%s0 + $0xa] sm:$0xff]
  %v180 = vld [vmem:[%s0 + $0x12] sm:$0xff]
  %v181 = vld [vmem:[%s0 + $0x1a] sm:$0xff]
  %v182 = vld [vmem:[%s0 + $0x22] sm:$0xff]
  %v183 = vpack.c.bf16 %v179, %v178
  %v184 = vpack.c.bf16 %v181, %v180
  %v185 = vpack.c.bf16 %v182, %v182
  %s186 = scalar_lea.vmem %s1, 8
  %v187 = vld [vmem:[%s186] sm:$0xf]
  %v189 = vsel %vm40, %v183, 0
  %v192 = vsel %vm40, %v184, 0
  %v195 = vsel %vm40, %v185, 0
  %v198 = vsel %vm50, %v187, 0
  %200 = vmatprep.subr.bf16.mxu0 0
  %201 = vmatpush1.bf16.msra.mxu0 %v198
  %202 = vmatprep.subr.bf16.mxu0 0
  %203 = vmatpush1.bf16.msra.mxu0 0
  %204 = vmatprep.subr.bf16.mxu0 0
  %205 = vmatpush1.bf16.msra.mxu0 0
  %206 = vmatprep.subr.bf16.mxu0 0
  %207 = vmatpush1.bf16.msra.mxu0 0
  %208 = vmatprep.subr.bf16.mxu0 0
  %209 = vmatpush1.bf16.msra.mxu0 0
  %210 = vmatprep.subr.bf16.mxu0 0
  %211 = vmatpush1.bf16.msra.mxu0 0
  %212 = vmatprep.subr.bf16.mxu0 0
  %213 = vmatpush1.bf16.msra.mxu0 0
  %214 = vmatprep.subr.bf16.mxu0 0
  %215 = vmatpush1.bf16.msra.mxu0 0
  %216 = vmatprep.subr.bf16.mxu0 0
  %217 = vmatpush1.bf16.msra.mxu0 0
  %218 = vmatprep.subr.bf16.mxu0 0
  %219 = vmatpush1.bf16.msra.mxu0 0
  %220 = vmatprep.subr.bf16.mxu0 0
  %221 = vmatpush1.bf16.msra.mxu0 0
  %222 = vmatprep.subr.bf16.mxu0 0
  %223 = vmatpush1.bf16.msra.mxu0 0
  %224 = vmatprep.subr.bf16.mxu0 0
  %225 = vmatpush1.bf16.msra.mxu0 0
  %226 = vmatprep.subr.bf16.mxu0 0
  %227 = vmatpush1.bf16.msra.mxu0 0
  %228 = vmatprep.subr.bf16.mxu0 0
  %229 = vmatpush1.bf16.msra.mxu0 0
  %230 = vmatprep.subr.bf16.mxu0 0
  %231 = vmatpush1.bf16.msra.mxu0 0
  %232 = vmatprep.mubr.bf16.mxu0 0
  %233 = vmatmul.mubr.bf16.gmra.mrb[0].mxu0 %v189
  %v234 = vpop.f32.mrb[0].mxu0
  %v235 = vadd.f32 0.0, %v234
  %v236 = vpop.f32.mrb[0].mxu0
  %v237 = vpop.f32.mrb[0].mxu0
  %v238 = vadd.f32 0.0, %v237
  %v239 = vpop.f32.mrb[0].mxu0
  %240 = vmatprep.mubr.bf16.mxu0 0
  %241 = vmatmul.mubr.bf16.gmra.mrb[0].mxu0 %v192
  %v242 = vpop.f32.mrb[0].mxu0
  %v243 = vadd.f32 0.0, %v242
  %v244 = vpop.f32.mrb[0].mxu0
  %v245 = vpop.f32.mrb[0].mxu0
  %v246 = vadd.f32 0.0, %v245
  %v247 = vpop.f32.mrb[0].mxu0
  %248 = vmatprep.mubr.bf16.mxu0 0
  %249 = vmatmul.mubr.bf16.gmra.mrb[0].mxu0 %v195
  %v250 = vpop.f32.mrb[0].mxu0
  %v251 = vadd.f32 0.0, %v250
  %v252 = vpop.f32.mrb[0].mxu0
  %v253 = vpop.f32.mrb[0].mxu0
  %v254 = vpop.f32.mrb[0].mxu0
  %255 = vdwg.mxu0
  %v256 = vadd.f32 %v157, %v235
  %v257 = vadd.f32 %v160, %v238
  %v258 = vadd.f32 %v165, %v243
  %v259 = vadd.f32 %v168, %v246
  %v260 = vadd.f32 %v173, %v251
  %v261 = vld [vmem:[%s0 + $0x3] sm:$0xff]
  %v262 = vld [vmem:[%s0 + $0xb] sm:$0xff]
  %v263 = vld [vmem:[%s0 + $0x13] sm:$0xff]
  %v264 = vld [vmem:[%s0 + $0x1b] sm:$0xff]
  %v265 = vld [vmem:[%s0 + $0x23] sm:$0xff]
  %v266 = vpack.c.bf16 %v262, %v261
  %v267 = vpack.c.bf16 %v264, %v263
  %v268 = vpack.c.bf16 %v265, %v265
  %s269 = scalar_lea.vmem %s1, 12
  %v270 = vld [vmem:[%s269] sm:$0xf]
  %v272 = vsel %vm40, %v266, 0
  %v275 = vsel %vm40, %v267, 0
  %v278 = vsel %vm40, %v268, 0
  %v281 = vsel %vm50, %v270, 0
  %283 = vmatprep.subr.bf16.mxu0 0
  %284 = vmatpush1.bf16.msra.mxu0 %v281
  %285 = vmatprep.subr.bf16.mxu0 0
  %286 = vmatpush1.bf16.msra.mxu0 0
  %287 = vmatprep.subr.bf16.mxu0 0
  %288 = vmatpush1.bf16.msra.mxu0 0
  %289 = vmatprep.subr.bf16.mxu0 0
  %290 = vmatpush1.bf16.msra.mxu0 0
  %291 = vmatprep.subr.bf16.mxu0 0
  %292 = vmatpush1.bf16.msra.mxu0 0
  %293 = vmatprep.subr.bf16.mxu0 0
  %294 = vmatpush1.bf16.msra.mxu0 0
  %295 = vmatprep.subr.bf16.mxu0 0
  %296 = vmatpush1.bf16.msra.mxu0 0
  %297 = vmatprep.subr.bf16.mxu0 0
  %298 = vmatpush1.bf16.msra.mxu0 0
  %299 = vmatprep.subr.bf16.mxu0 0
  %300 = vmatpush1.bf16.msra.mxu0 0
  %301 = vmatprep.subr.bf16.mxu0 0
  %302 = vmatpush1.bf16.msra.mxu0 0
  %303 = vmatprep.subr.bf16.mxu0 0
  %304 = vmatpush1.bf16.msra.mxu0 0
  %305 = vmatprep.subr.bf16.mxu0 0
  %306 = vmatpush1.bf16.msra.mxu0 0
  %307 = vmatprep.subr.bf16.mxu0 0
  %308 = vmatpush1.bf16.msra.mxu0 0
  %309 = vmatprep.subr.bf16.mxu0 0
  %310 = vmatpush1.bf16.msra.mxu0 0
  %311 = vmatprep.subr.bf16.mxu0 0
  %312 = vmatpush1.bf16.msra.mxu0 0
  %313 = vmatprep.subr.bf16.mxu0 0
  %314 = vmatpush1.bf16.msra.mxu0 0
  %315 = vmatprep.mubr.bf16.mxu0 0
  %316 = vmatmul.mubr.bf16.gmra.mrb[0].mxu0 %v272
  %v317 = vpop.f32.mrb[0].mxu0
  %v318 = vadd.f32 0.0, %v317
  %v319 = vpop.f32.mrb[0].mxu0
  %v320 = vpop.f32.mrb[0].mxu0
  %v321 = vadd.f32 0.0, %v320
  %v322 = vpop.f32.mrb[0].mxu0
  %323 = vmatprep.mubr.bf16.mxu0 0
  %324 = vmatmul.mubr.bf16.gmra.mrb[0].mxu0 %v275
  %v325 = vpop.f32.mrb[0].mxu0
  %v326 = vadd.f32 0.0, %v325
  %v327 = vpop.f32.mrb[0].mxu0
  %v328 = vpop.f32.mrb[0].mxu0
  %v329 = vadd.f32 0.0, %v328
  %v330 = vpop.f32.mrb[0].mxu0
  %331 = vmatprep.mubr.bf16.mxu0 0
  %332 = vmatmul.mubr.bf16.gmra.mrb[0].mxu0 %v278
  %v333 = vpop.f32.mrb[0].mxu0
  %v334 = vadd.f32 0.0, %v333
  %v335 = vpop.f32.mrb[0].mxu0
  %v336 = vpop.f32.mrb[0].mxu0
  %v337 = vpop.f32.mrb[0].mxu0
  %338 = vdwg.mxu0
  %v339 = vadd.f32 %v256, %v318
  %v340 = vadd.f32 %v257, %v321
  %v341 = vadd.f32 %v258, %v326
  %v342 = vadd.f32 %v259, %v329
  %v343 = vadd.f32 %v260, %v334
  %v344 = vld [vmem:[%s0 + $0x4] sm:$0xff]
  %v345 = vld [vmem:[%s0 + $0xc] sm:$0xff]
  %v346 = vld [vmem:[%s0 + $0x14] sm:$0xff]
  %v347 = vld [vmem:[%s0 + $0x1c] sm:$0xff]
  %v348 = vld [vmem:[%s0 + $0x24] sm:$0xff]
  %v349 = vpack.c.bf16 %v345, %v344
  %v350 = vpack.c.bf16 %v347, %v346
  %v351 = vpack.c.bf16 %v348, %v348
  %s352 = scalar_lea.vmem %s1, 16
  %v353 = vld [vmem:[%s352] sm:$0xf]
  %v355 = vsel %vm40, %v349, 0
  %v358 = vsel %vm40, %v350, 0
  %v361 = vsel %vm40, %v351, 0
  %v364 = vsel %vm50, %v353, 0
  %366 = vmatprep.subr.bf16.mxu0 0
  %367 = vmatpush1.bf16.msra.mxu0 %v364
  %368 = vmatprep.subr.bf16.mxu0 0
  %369 = vmatpush1.bf16.msra.mxu0 0
  %370 = vmatprep.subr.bf16.mxu0 0
  %371 = vmatpush1.bf16.msra.mxu0 0
  %372 = vmatprep.subr.bf16.mxu0 0
  %373 = vmatpush1.bf16.msra.mxu0 0
  %374 = vmatprep.subr.bf16.mxu0 0
  %375 = vmatpush1.bf16.msra.mxu0 0
  %376 = vmatprep.subr.bf16.mxu0 0
  %377 = vmatpush1.bf16.msra.mxu0 0
  %378 = vmatprep.subr.bf16.mxu0 0
  %379 = vmatpush1.bf16.msra.mxu0 0
  %380 = vmatprep.subr.bf16.mxu0 0
  %381 = vmatpush1.bf16.msra.mxu0 0
  %382 = vmatprep.subr.bf16.mxu0 0
  %383 = vmatpush1.bf16.msra.mxu0 0
  %384 = vmatprep.subr.bf16.mxu0 0
  %385 = vmatpush1.bf16.msra.mxu0 0
  %386 = vmatprep.subr.bf16.mxu0 0
  %387 = vmatpush1.bf16.msra.mxu0 0
  %388 = vmatprep.subr.bf16.mxu0 0
  %389 = vmatpush1.bf16.msra.mxu0 0
  %390 = vmatprep.subr.bf16.mxu0 0
  %391 = vmatpush1.bf16.msra.mxu0 0
  %392 = vmatprep.subr.bf16.mxu0 0
  %393 = vmatpush1.bf16.msra.mxu0 0
  %394 = vmatprep.subr.bf16.mxu0 0
  %395 = vmatpush1.bf16.msra.mxu0 0
  %396 = vmatprep.subr.bf16.mxu0 0
  %397 = vmatpush1.bf16.msra.mxu0 0
  %398 = vmatprep.mubr.bf16.mxu0 0
  %399 = vmatmul.mubr.bf16.gmra.mrb[0].mxu0 %v355
  %v400 = vpop.f32.mrb[0].mxu0
  %v401 = vadd.f32 0.0, %v400
  %v402 = vpop.f32.mrb[0].mxu0
  %v403 = vpop.f32.mrb[0].mxu0
  %v404 = vadd.f32 0.0, %v403
  %v405 = vpop.f32.mrb[0].mxu0
  %406 = vmatprep.mubr.bf16.mxu0 0
  %407 = vmatmul.mubr.bf16.gmra.mrb[0].mxu0 %v358
  %v408 = vpop.f32.mrb[0].mxu0
  %v409 = vadd.f32 0.0, %v408
  %v410 = vpop.f32.mrb[0].mxu0
  %v411 = vpop.f32.mrb[0].mxu0
  %v412 = vadd.f32 0.0, %v411
  %v413 = vpop.f32.mrb[0].mxu0
  %414 = vmatprep.mubr.bf16.mxu0 0
  %415 = vmatmul.mubr.bf16.gmra.mrb[0].mxu0 %v361
  %v416 = vpop.f32.mrb[0].mxu0
  %v417 = vadd.f32 0.0, %v416
  %v418 = vpop.f32.mrb[0].mxu0
  %v419 = vpop.f32.mrb[0].mxu0
  %v420 = vpop.f32.mrb[0].mxu0
  %421 = vdwg.mxu0
  %v422 = vadd.f32 %v339, %v401
  %v423 = vadd.f32 %v340, %v404
  %v424 = vadd.f32 %v341, %v409
  %v425 = vadd.f32 %v342, %v412
  %v426 = vadd.f32 %v343, %v417
  %vm427 = vcmask 261120
  %428 = vst.msk [vmem:[#allocation2] sm:$0xff] %vm427, %v422
  %429 = vst.msk [vmem:[#allocation2 + $0x8] sm:$0xff] %vm427, %v423
  %430 = vst.msk [vmem:[#allocation2 + $0x10] sm:$0xff] %vm427, %v424
  %431 = vst.msk [vmem:[#allocation2 + $0x18] sm:$0xff] %vm427, %v425
  %432 = vst.msk [vmem:[#allocation2 + $0x20] sm:$0xff] %vm427, %v426
  %s433 = scalar_lea.vmem %s0, 48
  %v434 = vld [vmem:[%s433] sm:$0xff]
  %v435 = vld [vmem:[%s433 + $0x8] sm:$0xff]
  %v436 = vld [vmem:[%s433 + $0x10] sm:$0xff]
  %v437 = vld [vmem:[%s433 + $0x18] sm:$0xff]
  %v438 = vld [vmem:[%s433 + $0x20] sm:$0xff]
  %v439 = vpack.c.bf16 %v435, %v434
  %v440 = vpack.c.bf16 %v437, %v436
  %v441 = vpack.c.bf16 %v438, %v438
  %v442 = vld [vmem:[%s1] sm:$0xf]
  %v443 = vld [vmem:[%s433 + $0x1] sm:$0xff]
  %v444 = vld [vmem:[%s433 + $0x9] sm:$0xff]
  %v445 = vld [vmem:[%s433 + $0x11] sm:$0xff]
  %v446 = vld [vmem:[%s433 + $0x19] sm:$0xff]
  %v447 = vld [vmem:[%s433 + $0x21] sm:$0xff]
  %v448 = vpack.c.bf16 %v444, %v443
  %v449 = vpack.c.bf16 %v446, %v445
  %v450 = vpack.c.bf16 %v447, %v447
  %v451 = vld [vmem:[%s38] sm:$0xf]
  %v453 = vsel %vm40, %v448, 0
  %v456 = vsel %vm40, %v449, 0
  %v459 = vsel %vm40, %v450, 0
  %v462 = vsel %vm50, %v451, 0
  %464 = vmatprep.subr.bf16.mxu0 0
  %465 = vmatpush1.bf16.msra.mxu0 %v462
  %466 = vmatprep.subr.bf16.mxu0 0
  %467 = vmatpush1.bf16.msra.mxu0 0
  %468 = vmatprep.subr.bf16.mxu0 0
  %469 = vmatpush1.bf16.msra.mxu0 0
  %470 = vmatprep.subr.bf16.mxu0 0
  %471 = vmatpush1.bf16.msra.mxu0 0
  %472 = vmatprep.subr.bf16.mxu0 0
  %473 = vmatpush1.bf16.msra.mxu0 0
  %474 = vmatprep.subr.bf16.mxu0 0
  %475 = vmatpush1.bf16.msra.mxu0 0
  %476 = vmatprep.subr.bf16.mxu0 0
  %477 = vmatpush1.bf16.msra.mxu0 0
  %478 = vmatprep.subr.bf16.mxu0 0
  %479 = vmatpush1.bf16.msra.mxu0 0
  %480 = vmatprep.subr.bf16.mxu0 0
  %481 = vmatpush1.bf16.msra.mxu0 0
  %482 = vmatprep.subr.bf16.mxu0 0
  %483 = vmatpush1.bf16.msra.mxu0 0
  %484 = vmatprep.subr.bf16.mxu0 0
  %485 = vmatpush1.bf16.msra.mxu0 0
  %486 = vmatprep.subr.bf16.mxu0 0
  %487 = vmatpush1.bf16.msra.mxu0 0
  %488 = vmatprep.subr.bf16.mxu0 0
  %489 = vmatpush1.bf16.msra.mxu0 0
  %490 = vmatprep.subr.bf16.mxu0 0
  %491 = vmatpush1.bf16.msra.mxu0 0
  %492 = vmatprep.subr.bf16.mxu0 0
  %493 = vmatpush1.bf16.msra.mxu0 0
  %494 = vmatprep.subr.bf16.mxu0 0
  %495 = vmatpush1.bf16.msra.mxu0 0
  %496 = vmatprep.mubr.bf16.mxu0 0
  %497 = vmatmul.mubr.bf16.gmra.mrb[0].mxu0 %v453
  %v498 = vpop.f32.mrb[0].mxu0
  %v499 = vadd.f32 0.0, %v498
  %v500 = vpop.f32.mrb[0].mxu0
  %v501 = vpop.f32.mrb[0].mxu0
  %v502 = vadd.f32 0.0, %v501
  %v503 = vpop.f32.mrb[0].mxu0
  %504 = vmatprep.mubr.bf16.mxu0 0
  %505 = vmatmul.mubr.bf16.gmra.mrb[0].mxu0 %v456
  %v506 = vpop.f32.mrb[0].mxu0
  %v507 = vadd.f32 0.0, %v506
  %v508 = vpop.f32.mrb[0].mxu0
  %v509 = vpop.f32.mrb[0].mxu0
  %v510 = vadd.f32 0.0, %v509
  %v511 = vpop.f32.mrb[0].mxu0
  %512 = vmatprep.mubr.bf16.mxu0 0
  %513 = vmatmul.mubr.bf16.gmra.mrb[0].mxu0 %v459
  %v514 = vpop.f32.mrb[0].mxu0
  %v515 = vadd.f32 0.0, %v514
  %v516 = vpop.f32.mrb[0].mxu0
  %v517 = vpop.f32.mrb[0].mxu0
  %v518 = vpop.f32.mrb[0].mxu0
  %519 = vdwg.mxu0
  %v521 = vsel %vm40, %v439, 0
  %v524 = vsel %vm40, %v440, 0
  %v527 = vsel %vm40, %v441, 0
  %v530 = vsel %vm50, %v442, 0
  %532 = vmatprep.subr.bf16.mxu0 0
  %533 = vmatpush1.bf16.msra.mxu0 %v530
  %534 = vmatprep.subr.bf16.mxu0 0
  %535 = vmatpush1.bf16.msra.mxu0 0
  %536 = vmatprep.subr.bf16.mxu0 0
  %537 = vmatpush1.bf16.msra.mxu0 0
  %538 = vmatprep.subr.bf16.mxu0 0
  %539 = vmatpush1.bf16.msra.mxu0 0
  %540 = vmatprep.subr.bf16.mxu0 0
  %541 = vmatpush1.bf16.msra.mxu0 0
  %542 = vmatprep.subr.bf16.mxu0 0
  %543 = vmatpush1.bf16.msra.mxu0 0
  %544 = vmatprep.subr.bf16.mxu0 0
  %545 = vmatpush1.bf16.msra.mxu0 0
  %546 = vmatprep.subr.bf16.mxu0 0
  %547 = vmatpush1.bf16.msra.mxu0 0
  %548 = vmatprep.subr.bf16.mxu0 0
  %549 = vmatpush1.bf16.msra.mxu0 0
  %550 = vmatprep.subr.bf16.mxu0 0
  %551 = vmatpush1.bf16.msra.mxu0 0
  %552 = vmatprep.subr.bf16.mxu0 0
  %553 = vmatpush1.bf16.msra.mxu0 0
  %554 = vmatprep.subr.bf16.mxu0 0
  %555 = vmatpush1.bf16.msra.mxu0 0
  %556 = vmatprep.subr.bf16.mxu0 0
  %557 = vmatpush1.bf16.msra.mxu0 0
  %558 = vmatprep.subr.bf16.mxu0 0
  %559 = vmatpush1.bf16.msra.mxu0 0
  %560 = vmatprep.subr.bf16.mxu0 0
  %561 = vmatpush1.bf16.msra.mxu0 0
  %562 = vmatprep.subr.bf16.mxu0 0
  %563 = vmatpush1.bf16.msra.mxu0 0
  %564 = vmatprep.mubr.bf16.mxu0 0
  %565 = vmatmul.mubr.bf16.gmra.mrb[0].mxu0 %v521
  %v566 = vpop.f32.mrb[0].mxu0
  %v567 = vadd.f32 %v499, %v566
  %v568 = vpop.f32.mrb[0].mxu0
  %v569 = vpop.f32.mrb[0].mxu0
  %v570 = vadd.f32 %v502, %v569
  %v571 = vpop.f32.mrb[0].mxu0
  %572 = vmatprep.mubr.bf16.mxu0 0
  %573 = vmatmul.mubr.bf16.gmra.mrb[0].mxu0 %v524
  %v574 = vpop.f32.mrb[0].mxu0
  %v575 = vadd.f32 %v507, %v574
  %v576 = vpop.f32.mrb[0].mxu0
  %v577 = vpop.f32.mrb[0].mxu0
  %v578 = vadd.f32 %v510, %v577
  %v579 = vpop.f32.mrb[0].mxu0
  %580 = vmatprep.mubr.bf16.mxu0 0
  %581 = vmatmul.mubr.bf16.gmra.mrb[0].mxu0 %v527
  %v582 = vpop.f32.mrb[0].mxu0
  %v583 = vadd.f32 %v515, %v582
  %v584 = vpop.f32.mrb[0].mxu0
  %v585 = vpop.f32.mrb[0].mxu0
  %v586 = vpop.f32.mrb[0].mxu0
  %587 = vdwg.mxu0
  %v588 = vld [vmem:[%s433 + $0x2] sm:$0xff]
  %v589 = vld [vmem:[%s433 + $0xa] sm:$0xff]
  %v590 = vld [vmem:[%s433 + $0x12] sm:$0xff]
  %v591 = vld [vmem:[%s433 + $0x1a] sm:$0xff]
  %v592 = vld [vmem:[%s433 + $0x22] sm:$0xff]
  %v593 = vpack.c.bf16 %v589, %v588
  %v594 = vpack.c.bf16 %v591, %v590
  %v595 = vpack.c.bf16 %v592, %v592
  %v596 = vld [vmem:[%s186] sm:$0xf]
  %v598 = vsel %vm40, %v593, 0
  %v601 = vsel %vm40, %v594, 0
  %v604 = vsel %vm40, %v595, 0
  %v607 = vsel %vm50, %v596, 0
  %609 = vmatprep.subr.bf16.mxu0 0
  %610 = vmatpush1.bf16.msra.mxu0 %v607
  %611 = vmatprep.subr.bf16.mxu0 0
  %612 = vmatpush1.bf16.msra.mxu0 0
  %613 = vmatprep.subr.bf16.mxu0 0
  %614 = vmatpush1.bf16.msra.mxu0 0
  %615 = vmatprep.subr.bf16.mxu0 0
  %616 = vmatpush1.bf16.msra.mxu0 0
  %617 = vmatprep.subr.bf16.mxu0 0
  %618 = vmatpush1.bf16.msra.mxu0 0
  %619 = vmatprep.subr.bf16.mxu0 0
  %620 = vmatpush1.bf16.msra.mxu0 0
  %621 = vmatprep.subr.bf16.mxu0 0
  %622 = vmatpush1.bf16.msra.mxu0 0
  %623 = vmatprep.subr.bf16.mxu0 0
  %624 = vmatpush1.bf16.msra.mxu0 0
  %625 = vmatprep.subr.bf16.mxu0 0
  %626 = vmatpush1.bf16.msra.mxu0 0
  %627 = vmatprep.subr.bf16.mxu0 0
  %628 = vmatpush1.bf16.msra.mxu0 0
  %629 = vmatprep.subr.bf16.mxu0 0
  %630 = vmatpush1.bf16.msra.mxu0 0
  %631 = vmatprep.subr.bf16.mxu0 0
  %632 = vmatpush1.bf16.msra.mxu0 0
  %633 = vmatprep.subr.bf16.mxu0 0
  %634 = vmatpush1.bf16.msra.mxu0 0
  %635 = vmatprep.subr.bf16.mxu0 0
  %636 = vmatpush1.bf16.msra.mxu0 0
  %637 = vmatprep.subr.bf16.mxu0 0
  %638 = vmatpush1.bf16.msra.mxu0 0
  %639 = vmatprep.subr.bf16.mxu0 0
  %640 = vmatpush1.bf16.msra.mxu0 0
  %641 = vmatprep.mubr.bf16.mxu0 0
  %642 = vmatmul.mubr.bf16.gmra.mrb[0].mxu0 %v598
  %v643 = vpop.f32.mrb[0].mxu0
  %v644 = vadd.f32 0.0, %v643
  %v645 = vpop.f32.mrb[0].mxu0
  %v646 = vpop.f32.mrb[0].mxu0
  %v647 = vadd.f32 0.0, %v646
  %v648 = vpop.f32.mrb[0].mxu0
  %649 = vmatprep.mubr.bf16.mxu0 0
  %650 = vmatmul.mubr.bf16.gmra.mrb[0].mxu0 %v601
  %v651 = vpop.f32.mrb[0].mxu0
  %v652 = vadd.f32 0.0, %v651
  %v653 = vpop.f32.mrb[0].mxu0
  %v654 = vpop.f32.mrb[0].mxu0
  %v655 = vadd.f32 0.0, %v654
  %v656 = vpop.f32.mrb[0].mxu0
  %657 = vmatprep.mubr.bf16.mxu0 0
  %658 = vmatmul.mubr.bf16.gmra.mrb[0].mxu0 %v604
  %v659 = vpop.f32.mrb[0].mxu0
  %v660 = vadd.f32 0.0, %v659
  %v661 = vpop.f32.mrb[0].mxu0
  %v662 = vpop.f32.mrb[0].mxu0
  %v663 = vpop.f32.mrb[0].mxu0
  %664 = vdwg.mxu0
  %v665 = vadd.f32 %v567, %v644
  %v666 = vadd.f32 %v570, %v647
  %v667 = vadd.f32 %v575, %v652
  %v668 = vadd.f32 %v578, %v655
  %v669 = vadd.f32 %v583, %v660
  %v670 = vld [vmem:[%s433 + $0x3] sm:$0xff]
  %v671 = vld [vmem:[%s433 + $0xb] sm:$0xff]
  %v672 = vld [vmem:[%s433 + $0x13] sm:$0xff]
  %v673 = vld [vmem:[%s433 + $0x1b] sm:$0xff]
  %v674 = vld [vmem:[%s433 + $0x23] sm:$0xff]
  %v675 = vpack.c.bf16 %v671, %v670
  %v676 = vpack.c.bf16 %v673, %v672
  %v677 = vpack.c.bf16 %v674, %v674
  %v678 = vld [vmem:[%s269] sm:$0xf]
  %v680 = vsel %vm40, %v675, 0
  %v683 = vsel %vm40, %v676, 0
  %v686 = vsel %vm40, %v677, 0
  %v689 = vsel %vm50, %v678, 0
  %691 = vmatprep.subr.bf16.mxu0 0
  %692 = vmatpush1.bf16.msra.mxu0 %v689
  %693 = vmatprep.subr.bf16.mxu0 0
  %694 = vmatpush1.bf16.msra.mxu0 0
  %695 = vmatprep.subr.bf16.mxu0 0
  %696 = vmatpush1.bf16.msra.mxu0 0
  %697 = vmatprep.subr.bf16.mxu0 0
  %698 = vmatpush1.bf16.msra.mxu0 0
  %699 = vmatprep.subr.bf16.mxu0 0
  %700 = vmatpush1.bf16.msra.mxu0 0
  %701 = vmatprep.subr.bf16.mxu0 0
  %702 = vmatpush1.bf16.msra.mxu0 0
  %703 = vmatprep.subr.bf16.mxu0 0
  %704 = vmatpush1.bf16.msra.mxu0 0
  %705 = vmatprep.subr.bf16.mxu0 0
  %706 = vmatpush1.bf16.msra.mxu0 0
  %707 = vmatprep.subr.bf16.mxu0 0
  %708 = vmatpush1.bf16.msra.mxu0 0
  %709 = vmatprep.subr.bf16.mxu0 0
  %710 = vmatpush1.bf16.msra.mxu0 0
  %711 = vmatprep.subr.bf16.mxu0 0
  %712 = vmatpush1.bf16.msra.mxu0 0
  %713 = vmatprep.subr.bf16.mxu0 0
  %714 = vmatpush1.bf16.msra.mxu0 0
  %715 = vmatprep.subr.bf16.mxu0 0
  %716 = vmatpush1.bf16.msra.mxu0 0
  %717 = vmatprep.subr.bf16.mxu0 0
  %718 = vmatpush1.bf16.msra.mxu0 0
  %719 = vmatprep.subr.bf16.mxu0 0
  %720 = vmatpush1.bf16.msra.mxu0 0
  %721 = vmatprep.subr.bf16.mxu0 0
  %722 = vmatpush1.bf16.msra.mxu0 0
  %723 = vmatprep.mubr.bf16.mxu0 0
  %724 = vmatmul.mubr.bf16.gmra.mrb[0].mxu0 %v680
  %v725 = vpop.f32.mrb[0].mxu0
  %v726 = vadd.f32 0.0, %v725
  %v727 = vpop.f32.mrb[0].mxu0
  %v728 = vpop.f32.mrb[0].mxu0
  %v729 = vadd.f32 0.0, %v728
  %v730 = vpop.f32.mrb[0].mxu0
  %731 = vmatprep.mubr.bf16.mxu0 0
  %732 = vmatmul.mubr.bf16.gmra.mrb[0].mxu0 %v683
  %v733 = vpop.f32.mrb[0].mxu0
  %v734 = vadd.f32 0.0, %v733
  %v735 = vpop.f32.mrb[0].mxu0
  %v736 = vpop.f32.mrb[0].mxu0
  %v737 = vadd.f32 0.0, %v736
  %v738 = vpop.f32.mrb[0].mxu0
  %739 = vmatprep.mubr.bf16.mxu0 0
  %740 = vmatmul.mubr.bf16.gmra.mrb[0].mxu0 %v686
  %v741 = vpop.f32.mrb[0].mxu0
  %v742 = vadd.f32 0.0, %v741
  %v743 = vpop.f32.mrb[0].mxu0
  %v744 = vpop.f32.mrb[0].mxu0
  %v745 = vpop.f32.mrb[0].mxu0
  %746 = vdwg.mxu0
  %v747 = vadd.f32 %v665, %v726
  %v748 = vadd.f32 %v666, %v729
  %v749 = vadd.f32 %v667, %v734
  %v750 = vadd.f32 %v668, %v737
  %v751 = vadd.f32 %v669, %v742
  %v752 = vld [vmem:[%s433 + $0x4] sm:$0xff]
  %v753 = vld [vmem:[%s433 + $0xc] sm:$0xff]
  %v754 = vld [vmem:[%s433 + $0x14] sm:$0xff]
  %v755 = vld [vmem:[%s433 + $0x1c] sm:$0xff]
  %v756 = vld [vmem:[%s433 + $0x24] sm:$0xff]
  %v757 = vpack.c.bf16 %v753, %v752
  %v758 = vpack.c.bf16 %v755, %v754
  %v759 = vpack.c.bf16 %v756, %v756
  %v760 = vld [vmem:[%s352] sm:$0xf]
  %v762 = vsel %vm40, %v757, 0
  %v765 = vsel %vm40, %v758, 0
  %v768 = vsel %vm40, %v759, 0
  %v771 = vsel %vm50, %v760, 0
  %773 = vmatprep.subr.bf16.mxu0 0
  %774 = vmatpush1.bf16.msra.mxu0 %v771
  %775 = vmatprep.subr.bf16.mxu0 0
  %776 = vmatpush1.bf16.msra.mxu0 0
  %777 = vmatprep.subr.bf16.mxu0 0
  %778 = vmatpush1.bf16.msra.mxu0 0
  %779 = vmatprep.subr.bf16.mxu0 0
  %780 = vmatpush1.bf16.msra.mxu0 0
  %781 = vmatprep.subr.bf16.mxu0 0
  %782 = vmatpush1.bf16.msra.mxu0 0
  %783 = vmatprep.subr.bf16.mxu0 0
  %784 = vmatpush1.bf16.msra.mxu0 0
  %785 = vmatprep.subr.bf16.mxu0 0
  %786 = vmatpush1.bf16.msra.mxu0 0
  %787 = vmatprep.subr.bf16.mxu0 0
  %788 = vmatpush1.bf16.msra.mxu0 0
  %789 = vmatprep.subr.bf16.mxu0 0
  %790 = vmatpush1.bf16.msra.mxu0 0
  %791 = vmatprep.subr.bf16.mxu0 0
  %792 = vmatpush1.bf16.msra.mxu0 0
  %793 = vmatprep.subr.bf16.mxu0 0
  %794 = vmatpush1.bf16.msra.mxu0 0
  %795 = vmatprep.subr.bf16.mxu0 0
  %796 = vmatpush1.bf16.msra.mxu0 0
  %797 = vmatprep.subr.bf16.mxu0 0
  %798 = vmatpush1.bf16.msra.mxu0 0
  %799 = vmatprep.subr.bf16.mxu0 0
  %800 = vmatpush1.bf16.msra.mxu0 0
  %801 = vmatprep.subr.bf16.mxu0 0
  %802 = vmatpush1.bf16.msra.mxu0 0
  %803 = vmatprep.subr.bf16.mxu0 0
  %804 = vmatpush1.bf16.msra.mxu0 0
  %805 = vmatprep.mubr.bf16.mxu0 0
  %806 = vmatmul.mubr.bf16.gmra.mrb[0].mxu0 %v762
  %v807 = vpop.f32.mrb[0].mxu0
  %v808 = vadd.f32 0.0, %v807
  %v809 = vpop.f32.mrb[0].mxu0
  %v810 = vpop.f32.mrb[0].mxu0
  %v811 = vadd.f32 0.0, %v810
  %v812 = vpop.f32.mrb[0].mxu0
  %813 = vmatprep.mubr.bf16.mxu0 0
  %814 = vmatmul.mubr.bf16.gmra.mrb[0].mxu0 %v765
  %v815 = vpop.f32.mrb[0].mxu0
  %v816 = vadd.f32 0.0, %v815
  %v817 = vpop.f32.mrb[0].mxu0
  %v818 = vpop.f32.mrb[0].mxu0
  %v819 = vadd.f32 0.0, %v818
  %v820 = vpop.f32.mrb[0].mxu0
  %821 = vmatprep.mubr.bf16.mxu0 0
  %822 = vmatmul.mubr.bf16.gmra.mrb[0].mxu0 %v768
  %v823 = vpop.f32.mrb[0].mxu0
  %v824 = vadd.f32 0.0, %v823
  %v825 = vpop.f32.mrb[0].mxu0
  %v826 = vpop.f32.mrb[0].mxu0
  %v827 = vpop.f32.mrb[0].mxu0
  %828 = vdwg.mxu0
  %v829 = vadd.f32 %v747, %v808
  %v830 = vadd.f32 %v748, %v811
  %v831 = vadd.f32 %v749, %v816
  %v832 = vadd.f32 %v750, %v819
  %v833 = vadd.f32 %v751, %v824
  %834 = vst.msk [vmem:[#allocation2 + $0x28] sm:$0xff] %vm427, %v829
  %835 = vst.msk [vmem:[#allocation2 + $0x30] sm:$0xff] %vm427, %v830
  %836 = vst.msk [vmem:[#allocation2 + $0x38] sm:$0xff] %vm427, %v831
  %837 = vst.msk [vmem:[#allocation2 + $0x40] sm:$0xff] %vm427, %v832
  %838 = vst.msk [vmem:[#allocation2 + $0x48] sm:$0xff] %vm427, %v833
  %v839 = vld [vmem:[#allocation2] ss:$5 sm:$0xff]
  %s840 = scalar_lea.vmem [#allocation2], 40
  %v841 = vld [vmem:[%s840] ss:$5 sm:$0xff]
  %s842 = scalar_lea.vmem [#allocation2], 1
  %v843 = vld [vmem:[%s842] ss:$5 sm:$0xff]
  %s844 = scalar_lea.vmem [#allocation2], 41
  %v845 = vld [vmem:[%s844] ss:$5 sm:$0xff]
  %v846 = vmax.f32 %v839, %v843
  %v847 = vmax.f32 %v841, %v845
  %s848 = scalar_lea.vmem [#allocation2], 2
  %v849 = vld [vmem:[%s848] ss:$5 sm:$0xff]
  %s850 = scalar_lea.vmem [#allocation2], 42
  %v851 = vld [vmem:[%s850] ss:$5 sm:$0xff]
  %v852 = vmax.f32 %v846, %v849
  %v853 = vmax.f32 %v847, %v851
  %s854 = scalar_lea.vmem [#allocation2], 3
  %v855 = vld [vmem:[%s854] ss:$5 sm:$0xff]
  %s856 = scalar_lea.vmem [#allocation2], 43
  %v857 = vld [vmem:[%s856] ss:$5 sm:$0xff]
  %v858 = vmax.f32 %v852, %v855
  %v859 = vmax.f32 %v853, %v857
  %s860 = scalar_lea.vmem [#allocation2], 4
  %v861 = vld [vmem:[%s860] ss:$5 sm:$0xff]
  %s862 = scalar_lea.vmem [#allocation2], 44
  %v863 = vld [vmem:[%s862] ss:$5 sm:$0xff]
  %v864 = vmax.f32 %v858, %v861
  %v865 = vmax.f32 %v859, %v863
  %v866 = vld [vmem:[%s2] sm:$0x1]
  %v868 = vlaneseq
  %v869 = vshrl.u32 %v868, 7
  %v870 = vsub.s32 0, %v869
  %v871 = vrot.slane %v866, %v870
  %v873 = vadd.f32 %v864, %v871
  %v874 = vadd.f32 %v865, %v871
  %v875 = vmax.f32 %v873, 0.0
  %v876 = vmax.f32 %v874, 0.0
  %877 = vst.msk [vmem:[#allocation3] sm:$0xff] %vm427, %v875
  %878 = vst.msk [vmem:[#allocation3 + $0x8] sm:$0xff] %vm427, %v876
  %v879 = vld [vmem:[#allocation3] ss:$8 sm:$0x3]
  %v880 = vpack.c.bf16 %v879, %v879
  %v881 = vld [vmem:[%s3] sm:$0xf]
  %v882 = vld [vmem:[%s3 + $0x4] sm:$0xf]
  %v883 = vld [vmem:[%s3 + $0x8] sm:$0xf]
  %v884 = vld [vmem:[%s3 + $0xc] sm:$0xf]
  %s885 = scalar_lea.vmem [#allocation3], 1
  %v886 = vld [vmem:[%s885] ss:$8 sm:$0x3]
  %v887 = vpack.c.bf16 %v886, %v886
  %s888 = scalar_lea.vmem %s3, 16
  %v889 = vld [vmem:[%s888] sm:$0xf]
  %v890 = vld [vmem:[%s888 + $0x4] sm:$0xf]
  %v891 = vld [vmem:[%s888 + $0x8] sm:$0xf]
  %v892 = vld [vmem:[%s888 + $0xc] sm:$0xf]
  %v897 = vunpack.c.l.b16 %v889
  %v898 = vunpack.c.l.b16 %v890
  %v899 = vunpack.c.l.b16 %v891
  %v900 = vunpack.c.l.b16 %v892
  %v901 = vpack.c.b16 %v898, %v897
  %v902 = vpack.c.b16 %v900, %v899
  %v906 = vsel %vm427, %v887, 0
  %908 = vmatprep.subr.bf16.mxu0 0
  %909 = vmatpush1.bf16.msra.mxu0 %v901
  %910 = vmatprep.subr.bf16.mxu0 0
  %911 = vmatpush1.bf16.msra.mxu0 %v902
  %912 = vmatprep.subr.bf16.mxu0 0
  %913 = vmatpush1.bf16.msra.mxu0 0
  %914 = vmatprep.subr.bf16.mxu0 0
  %915 = vmatpush1.bf16.msra.mxu0 0
  %916 = vmatprep.subr.bf16.mxu0 0
  %917 = vmatpush1.bf16.msra.mxu0 0
  %918 = vmatprep.subr.bf16.mxu0 0
  %919 = vmatpush1.bf16.msra.mxu0 0
  %920 = vmatprep.subr.bf16.mxu0 0
  %921 = vmatpush1.bf16.msra.mxu0 0
  %922 = vmatprep.subr.bf16.mxu0 0
  %923 = vmatpush1.bf16.msra.mxu0 0
  %924 = vmatprep.subr.bf16.mxu0 0
  %925 = vmatpush1.bf16.msra.mxu0 0
  %926 = vmatprep.subr.bf16.mxu0 0
  %927 = vmatpush1.bf16.msra.mxu0 0
  %928 = vmatprep.subr.bf16.mxu0 0
  %929 = vmatpush1.bf16.msra.mxu0 0
  %930 = vmatprep.subr.bf16.mxu0 0
  %931 = vmatpush1.bf16.msra.mxu0 0
  %932 = vmatprep.subr.bf16.mxu0 0
  %933 = vmatpush1.bf16.msra.mxu0 0
  %934 = vmatprep.subr.bf16.mxu0 0
  %935 = vmatpush1.bf16.msra.mxu0 0
  %936 = vmatprep.subr.bf16.mxu0 0
  %937 = vmatpush1.bf16.msra.mxu0 0
  %938 = vmatprep.subr.bf16.mxu0 0
  %939 = vmatpush1.bf16.msra.mxu0 0
  %940 = vmatprep.mubr.bf16.mxu0 0
  %941 = vmatmul.mubr.bf16.gmra.mrb[0].mxu0 %v906
  %v942 = vpop.f32.mrb[0].mxu0
  %v943 = vadd.f32 0.0, %v942
  %v944 = vpop.f32.mrb[0].mxu0
  %v945 = vpop.f32.mrb[0].mxu0
  %v946 = vpop.f32.mrb[0].mxu0
  %947 = vdwg.mxu0
  %v952 = vunpack.c.l.b16 %v881
  %v953 = vunpack.c.l.b16 %v882
  %v954 = vunpack.c.l.b16 %v883
  %v955 = vunpack.c.l.b16 %v884
  %v956 = vpack.c.b16 %v953, %v952
  %v957 = vpack.c.b16 %v955, %v954
  %v961 = vsel %vm427, %v880, 0
  %963 = vmatprep.subr.bf16.mxu0 0
  %964 = vmatpush1.bf16.msra.mxu0 %v956
  %965 = vmatprep.subr.bf16.mxu0 0
  %966 = vmatpush1.bf16.msra.mxu0 %v957
  %967 = vmatprep.subr.bf16.mxu0 0
  %968 = vmatpush1.bf16.msra.mxu0 0
  %969 = vmatprep.subr.bf16.mxu0 0
  %970 = vmatpush1.bf16.msra.mxu0 0
  %971 = vmatprep.subr.bf16.mxu0 0
  %972 = vmatpush1.bf16.msra.mxu0 0
  %973 = vmatprep.subr.bf16.mxu0 0
  %974 = vmatpush1.bf16.msra.mxu0 0
  %975 = vmatprep.subr.bf16.mxu0 0
  %976 = vmatpush1.bf16.msra.mxu0 0
  %977 = vmatprep.subr.bf16.mxu0 0
  %978 = vmatpush1.bf16.msra.mxu0 0
  %979 = vmatprep.subr.bf16.mxu0 0
  %980 = vmatpush1.bf16.msra.mxu0 0
  %981 = vmatprep.subr.bf16.mxu0 0
  %982 = vmatpush1.bf16.msra.mxu0 0
  %983 = vmatprep.subr.bf16.mxu0 0
  %984 = vmatpush1.bf16.msra.mxu0 0
  %985 = vmatprep.subr.bf16.mxu0 0
  %986 = vmatpush1.bf16.msra.mxu0 0
  %987 = vmatprep.subr.bf16.mxu0 0
  %988 = vmatpush1.bf16.msra.mxu0 0
  %989 = vmatprep.subr.bf16.mxu0 0
  %990 = vmatpush1.bf16.msra.mxu0 0
  %991 = vmatprep.subr.bf16.mxu0 0
  %992 = vmatpush1.bf16.msra.mxu0 0
  %993 = vmatprep.subr.bf16.mxu0 0
  %994 = vmatpush1.bf16.msra.mxu0 0
  %995 = vmatprep.mubr.bf16.mxu0 0
  %996 = vmatmul.mubr.bf16.gmra.mrb[0].mxu0 %v961
  %v997 = vpop.f32.mrb[0].mxu0
  %v998 = vadd.f32 %v943, %v997
  %v999 = vpop.f32.mrb[0].mxu0
  %v1000 = vpop.f32.mrb[0].mxu0
  %v1001 = vpop.f32.mrb[0].mxu0
  %1002 = vdwg.mxu0
  %s1003 = scalar_lea.vmem [#allocation3], 2
  %v1004 = vld [vmem:[%s1003] ss:$8 sm:$0x3]
  %v1005 = vpack.c.bf16 %v1004, %v1004
  %s1006 = scalar_lea.vmem %s3, 32
  %v1007 = vld [vmem:[%s1006] sm:$0xf]
  %v1008 = vld [vmem:[%s1006 + $0x4] sm:$0xf]
  %v1009 = vld [vmem:[%s1006 + $0x8] sm:$0xf]
  %v1010 = vld [vmem:[%s1006 + $0xc] sm:$0xf]
  %v1015 = vunpack.c.l.b16 %v1007
  %v1016 = vunpack.c.l.b16 %v1008
  %v1017 = vunpack.c.l.b16 %v1009
  %v1018 = vunpack.c.l.b16 %v1010
  %v1019 = vpack.c.b16 %v1016, %v1015
  %v1020 = vpack.c.b16 %v1018, %v1017
  %v1024 = vsel %vm427, %v1005, 0
  %1026 = vmatprep.subr.bf16.mxu0 0
  %1027 = vmatpush1.bf16.msra.mxu0 %v1019
  %1028 = vmatprep.subr.bf16.mxu0 0
  %1029 = vmatpush1.bf16.msra.mxu0 %v1020
  %1030 = vmatprep.subr.bf16.mxu0 0
  %1031 = vmatpush1.bf16.msra.mxu0 0
  %1032 = vmatprep.subr.bf16.mxu0 0
  %1033 = vmatpush1.bf16.msra.mxu0 0
  %1034 = vmatprep.subr.bf16.mxu0 0
  %1035 = vmatpush1.bf16.msra.mxu0 0
  %1036 = vmatprep.subr.bf16.mxu0 0
  %1037 = vmatpush1.bf16.msra.mxu0 0
  %1038 = vmatprep.subr.bf16.mxu0 0
  %1039 = vmatpush1.bf16.msra.mxu0 0
  %1040 = vmatprep.subr.bf16.mxu0 0
  %1041 = vmatpush1.bf16.msra.mxu0 0
  %1042 = vmatprep.subr.bf16.mxu0 0
  %1043 = vmatpush1.bf16.msra.mxu0 0
  %1044 = vmatprep.subr.bf16.mxu0 0
  %1045 = vmatpush1.bf16.msra.mxu0 0
  %1046 = vmatprep.subr.bf16.mxu0 0
  %1047 = vmatpush1.bf16.msra.mxu0 0
  %1048 = vmatprep.subr.bf16.mxu0 0
  %1049 = vmatpush1.bf16.msra.mxu0 0
  %1050 = vmatprep.subr.bf16.mxu0 0
  %1051 = vmatpush1.bf16.msra.mxu0 0
  %1052 = vmatprep.subr.bf16.mxu0 0
  %1053 = vmatpush1.bf16.msra.mxu0 0
  %1054 = vmatprep.subr.bf16.mxu0 0
  %1055 = vmatpush1.bf16.msra.mxu0 0
  %1056 = vmatprep.subr.bf16.mxu0 0
  %1057 = vmatpush1.bf16.msra.mxu0 0
  %1058 = vmatprep.mubr.bf16.mxu0 0
  %1059 = vmatmul.mubr.bf16.gmra.mrb[0].mxu0 %v1024
  %v1060 = vpop.f32.mrb[0].mxu0
  %v1061 = vadd.f32 0.0, %v1060
  %v1062 = vpop.f32.mrb[0].mxu0
  %v1063 = vpop.f32.mrb[0].mxu0
  %v1064 = vpop.f32.mrb[0].mxu0
  %1065 = vdwg.mxu0
  %v1066 = vadd.f32 %v998, %v1061
  %s1067 = scalar_lea.vmem [#allocation3], 3
  %v1068 = vld [vmem:[%s1067] ss:$8 sm:$0x3]
  %v1069 = vpack.c.bf16 %v1068, %v1068
  %s1070 = scalar_lea.vmem %s3, 48
  %v1071 = vld [vmem:[%s1070] sm:$0xf]
  %v1072 = vld [vmem:[%s1070 + $0x4] sm:$0xf]
  %v1073 = vld [vmem:[%s1070 + $0x8] sm:$0xf]
  %v1074 = vld [vmem:[%s1070 + $0xc] sm:$0xf]
  %v1079 = vunpack.c.l.b16 %v1071
  %v1080 = vunpack.c.l.b16 %v1072
  %v1081 = vunpack.c.l.b16 %v1073
  %v1082 = vunpack.c.l.b16 %v1074
  %v1083 = vpack.c.b16 %v1080, %v1079
  %v1084 = vpack.c.b16 %v1082, %v1081
  %v1088 = vsel %vm427, %v1069, 0
  %1090 = vmatprep.subr.bf16.mxu0 0
  %1091 = vmatpush1.bf16.msra.mxu0 %v1083
  %1092 = vmatprep.subr.bf16.mxu0 0
  %1093 = vmatpush1.bf16.msra.mxu0 %v1084
  %1094 = vmatprep.subr.bf16.mxu0 0
  %1095 = vmatpush1.bf16.msra.mxu0 0
  %1096 = vmatprep.subr.bf16.mxu0 0
  %1097 = vmatpush1.bf16.msra.mxu0 0
  %1098 = vmatprep.subr.bf16.mxu0 0
  %1099 = vmatpush1.bf16.msra.mxu0 0
  %1100 = vmatprep.subr.bf16.mxu0 0
  %1101 = vmatpush1.bf16.msra.mxu0 0
  %1102 = vmatprep.subr.bf16.mxu0 0
  %1103 = vmatpush1.bf16.msra.mxu0 0
  %1104 = vmatprep.subr.bf16.mxu0 0
  %1105 = vmatpush1.bf16.msra.mxu0 0
  %1106 = vmatprep.subr.bf16.mxu0 0
  %1107 = vmatpush1.bf16.msra.mxu0 0
  %1108 = vmatprep.subr.bf16.mxu0 0
  %1109 = vmatpush1.bf16.msra.mxu0 0
  %1110 = vmatprep.subr.bf16.mxu0 0
  %1111 = vmatpush1.bf16.msra.mxu0 0
  %1112 = vmatprep.subr.bf16.mxu0 0
  %1113 = vmatpush1.bf16.msra.mxu0 0
  %1114 = vmatprep.subr.bf16.mxu0 0
  %1115 = vmatpush1.bf16.msra.mxu0 0
  %1116 = vmatprep.subr.bf16.mxu0 0
  %1117 = vmatpush1.bf16.msra.mxu0 0
  %1118 = vmatprep.subr.bf16.mxu0 0
  %1119 = vmatpush1.bf16.msra.mxu0 0
  %1120 = vmatprep.subr.bf16.mxu0 0
  %1121 = vmatpush1.bf16.msra.mxu0 0
  %1122 = vmatprep.mubr.bf16.mxu0 0
  %1123 = vmatmul.mubr.bf16.gmra.mrb[0].mxu0 %v1088
  %v1124 = vpop.f32.mrb[0].mxu0
  %v1125 = vadd.f32 0.0, %v1124
  %v1126 = vpop.f32.mrb[0].mxu0
  %v1127 = vpop.f32.mrb[0].mxu0
  %v1128 = vpop.f32.mrb[0].mxu0
  %1129 = vdwg.mxu0
  %v1130 = vadd.f32 %v1066, %v1125
  %s1131 = scalar_lea.vmem [#allocation3], 4
  %v1132 = vld [vmem:[%s1131] ss:$8 sm:$0x3]
  %v1133 = vpack.c.bf16 %v1132, %v1132
  %s1134 = scalar_lea.vmem %s3, 64
  %v1135 = vld [vmem:[%s1134] sm:$0xf]
  %v1136 = vld [vmem:[%s1134 + $0x4] sm:$0xf]
  %v1137 = vld [vmem:[%s1134 + $0x8] sm:$0xf]
  %v1138 = vld [vmem:[%s1134 + $0xc] sm:$0xf]
  %v1143 = vunpack.c.l.b16 %v1135
  %v1144 = vunpack.c.l.b16 %v1136
  %v1145 = vunpack.c.l.b16 %v1137
  %v1146 = vunpack.c.l.b16 %v1138
  %v1147 = vpack.c.b16 %v1144, %v1143
  %v1148 = vpack.c.b16 %v1146, %v1145
  %v1152 = vsel %vm427, %v1133, 0
  %1154 = vmatprep.subr.bf16.mxu0 0
  %1155 = vmatpush1.bf16.msra.mxu0 %v1147
  %1156 = vmatprep.subr.bf16.mxu0 0
  %1157 = vmatpush1.bf16.msra.mxu0 %v1148
  %1158 = vmatprep.subr.bf16.mxu0 0
  %1159 = vmatpush1.bf16.msra.mxu0 0
  %1160 = vmatprep.subr.bf16.mxu0 0
  %1161 = vmatpush1.bf16.msra.mxu0 0
  %1162 = vmatprep.subr.bf16.mxu0 0
  %1163 = vmatpush1.bf16.msra.mxu0 0
  %1164 = vmatprep.subr.bf16.mxu0 0
  %1165 = vmatpush1.bf16.msra.mxu0 0
  %1166 = vmatprep.subr.bf16.mxu0 0
  %1167 = vmatpush1.bf16.msra.mxu0 0
  %1168 = vmatprep.subr.bf16.mxu0 0
  %1169 = vmatpush1.bf16.msra.mxu0 0
  %1170 = vmatprep.subr.bf16.mxu0 0
  %1171 = vmatpush1.bf16.msra.mxu0 0
  %1172 = vmatprep.subr.bf16.mxu0 0
  %1173 = vmatpush1.bf16.msra.mxu0 0
  %1174 = vmatprep.subr.bf16.mxu0 0
  %1175 = vmatpush1.bf16.msra.mxu0 0
  %1176 = vmatprep.subr.bf16.mxu0 0
  %1177 = vmatpush1.bf16.msra.mxu0 0
  %1178 = vmatprep.subr.bf16.mxu0 0
  %1179 = vmatpush1.bf16.msra.mxu0 0
  %1180 = vmatprep.subr.bf16.mxu0 0
  %1181 = vmatpush1.bf16.msra.mxu0 0
  %1182 = vmatprep.subr.bf16.mxu0 0
  %1183 = vmatpush1.bf16.msra.mxu0 0
  %1184 = vmatprep.subr.bf16.mxu0 0
  %1185 = vmatpush1.bf16.msra.mxu0 0
  %1186 = vmatprep.mubr.bf16.mxu0 0
  %1187 = vmatmul.mubr.bf16.gmra.mrb[0].mxu0 %v1152
  %v1188 = vpop.f32.mrb[0].mxu0
  %v1189 = vadd.f32 0.0, %v1188
  %v1190 = vpop.f32.mrb[0].mxu0
  %v1191 = vpop.f32.mrb[0].mxu0
  %v1192 = vpop.f32.mrb[0].mxu0
  %1193 = vdwg.mxu0
  %v1194 = vadd.f32 %v1130, %v1189
  %s1195 = scalar_lea.vmem [#allocation3], 5
  %v1196 = vld [vmem:[%s1195] ss:$8 sm:$0x3]
  %v1197 = vpack.c.bf16 %v1196, %v1196
  %s1198 = scalar_lea.vmem %s3, 80
  %v1199 = vld [vmem:[%s1198] sm:$0xf]
  %v1200 = vld [vmem:[%s1198 + $0x4] sm:$0xf]
  %v1201 = vld [vmem:[%s1198 + $0x8] sm:$0xf]
  %v1202 = vld [vmem:[%s1198 + $0xc] sm:$0xf]
  %v1207 = vunpack.c.l.b16 %v1199
  %v1208 = vunpack.c.l.b16 %v1200
  %v1209 = vunpack.c.l.b16 %v1201
  %v1210 = vunpack.c.l.b16 %v1202
  %v1211 = vpack.c.b16 %v1208, %v1207
  %v1212 = vpack.c.b16 %v1210, %v1209
  %v1216 = vsel %vm427, %v1197, 0
  %1218 = vmatprep.subr.bf16.mxu0 0
  %1219 = vmatpush1.bf16.msra.mxu0 %v1211
  %1220 = vmatprep.subr.bf16.mxu0 0
  %1221 = vmatpush1.bf16.msra.mxu0 %v1212
  %1222 = vmatprep.subr.bf16.mxu0 0
  %1223 = vmatpush1.bf16.msra.mxu0 0
  %1224 = vmatprep.subr.bf16.mxu0 0
  %1225 = vmatpush1.bf16.msra.mxu0 0
  %1226 = vmatprep.subr.bf16.mxu0 0
  %1227 = vmatpush1.bf16.msra.mxu0 0
  %1228 = vmatprep.subr.bf16.mxu0 0
  %1229 = vmatpush1.bf16.msra.mxu0 0
  %1230 = vmatprep.subr.bf16.mxu0 0
  %1231 = vmatpush1.bf16.msra.mxu0 0
  %1232 = vmatprep.subr.bf16.mxu0 0
  %1233 = vmatpush1.bf16.msra.mxu0 0
  %1234 = vmatprep.subr.bf16.mxu0 0
  %1235 = vmatpush1.bf16.msra.mxu0 0
  %1236 = vmatprep.subr.bf16.mxu0 0
  %1237 = vmatpush1.bf16.msra.mxu0 0
  %1238 = vmatprep.subr.bf16.mxu0 0
  %1239 = vmatpush1.bf16.msra.mxu0 0
  %1240 = vmatprep.subr.bf16.mxu0 0
  %1241 = vmatpush1.bf16.msra.mxu0 0
  %1242 = vmatprep.subr.bf16.mxu0 0
  %1243 = vmatpush1.bf16.msra.mxu0 0
  %1244 = vmatprep.subr.bf16.mxu0 0
  %1245 = vmatpush1.bf16.msra.mxu0 0
  %1246 = vmatprep.subr.bf16.mxu0 0
  %1247 = vmatpush1.bf16.msra.mxu0 0
  %1248 = vmatprep.subr.bf16.mxu0 0
  %1249 = vmatpush1.bf16.msra.mxu0 0
  %1250 = vmatprep.mubr.bf16.mxu0 0
  %1251 = vmatmul.mubr.bf16.gmra.mrb[0].mxu0 %v1216
  %v1252 = vpop.f32.mrb[0].mxu0
  %v1253 = vadd.f32 0.0, %v1252
  %v1254 = vpop.f32.mrb[0].mxu0
  %v1255 = vpop.f32.mrb[0].mxu0
  %v1256 = vpop.f32.mrb[0].mxu0
  %1257 = vdwg.mxu0
  %v1258 = vadd.f32 %v1194, %v1253
  %s1259 = scalar_lea.vmem [#allocation3], 6
  %v1260 = vld [vmem:[%s1259] ss:$8 sm:$0x3]
  %v1261 = vpack.c.bf16 %v1260, %v1260
  %s1262 = scalar_lea.vmem %s3, 96
  %v1263 = vld [vmem:[%s1262] sm:$0xf]
  %v1264 = vld [vmem:[%s1262 + $0x4] sm:$0xf]
  %v1265 = vld [vmem:[%s1262 + $0x8] sm:$0xf]
  %v1266 = vld [vmem:[%s1262 + $0xc] sm:$0xf]
  %v1271 = vunpack.c.l.b16 %v1263
  %v1272 = vunpack.c.l.b16 %v1264
  %v1273 = vunpack.c.l.b16 %v1265
  %v1274 = vunpack.c.l.b16 %v1266
  %v1275 = vpack.c.b16 %v1272, %v1271
  %v1276 = vpack.c.b16 %v1274, %v1273
  %v1280 = vsel %vm427, %v1261, 0
  %1282 = vmatprep.subr.bf16.mxu0 0
  %1283 = vmatpush1.bf16.msra.mxu0 %v1275
  %1284 = vmatprep.subr.bf16.mxu0 0
  %1285 = vmatpush1.bf16.msra.mxu0 %v1276
  %1286 = vmatprep.subr.bf16.mxu0 0
  %1287 = vmatpush1.bf16.msra.mxu0 0
  %1288 = vmatprep.subr.bf16.mxu0 0
  %1289 = vmatpush1.bf16.msra.mxu0 0
  %1290 = vmatprep.subr.bf16.mxu0 0
  %1291 = vmatpush1.bf16.msra.mxu0 0
  %1292 = vmatprep.subr.bf16.mxu0 0
  %1293 = vmatpush1.bf16.msra.mxu0 0
  %1294 = vmatprep.subr.bf16.mxu0 0
  %1295 = vmatpush1.bf16.msra.mxu0 0
  %1296 = vmatprep.subr.bf16.mxu0 0
  %1297 = vmatpush1.bf16.msra.mxu0 0
  %1298 = vmatprep.subr.bf16.mxu0 0
  %1299 = vmatpush1.bf16.msra.mxu0 0
  %1300 = vmatprep.subr.bf16.mxu0 0
  %1301 = vmatpush1.bf16.msra.mxu0 0
  %1302 = vmatprep.subr.bf16.mxu0 0
  %1303 = vmatpush1.bf16.msra.mxu0 0
  %1304 = vmatprep.subr.bf16.mxu0 0
  %1305 = vmatpush1.bf16.msra.mxu0 0
  %1306 = vmatprep.subr.bf16.mxu0 0
  %1307 = vmatpush1.bf16.msra.mxu0 0
  %1308 = vmatprep.subr.bf16.mxu0 0
  %1309 = vmatpush1.bf16.msra.mxu0 0
  %1310 = vmatprep.subr.bf16.mxu0 0
  %1311 = vmatpush1.bf16.msra.mxu0 0
  %1312 = vmatprep.subr.bf16.mxu0 0
  %1313 = vmatpush1.bf16.msra.mxu0 0
  %1314 = vmatprep.mubr.bf16.mxu0 0
  %1315 = vmatmul.mubr.bf16.gmra.mrb[0].mxu0 %v1280
  %v1316 = vpop.f32.mrb[0].mxu0
  %v1317 = vadd.f32 0.0, %v1316
  %v1318 = vpop.f32.mrb[0].mxu0
  %v1319 = vpop.f32.mrb[0].mxu0
  %v1320 = vpop.f32.mrb[0].mxu0
  %1321 = vdwg.mxu0
  %v1322 = vadd.f32 %v1258, %v1317
  %s1323 = scalar_lea.vmem [#allocation3], 7
  %v1324 = vld [vmem:[%s1323] ss:$8 sm:$0x3]
  %v1325 = vpack.c.bf16 %v1324, %v1324
  %s1326 = scalar_lea.vmem %s3, 112
  %v1327 = vld [vmem:[%s1326] sm:$0xf]
  %v1328 = vld [vmem:[%s1326 + $0x4] sm:$0xf]
  %v1329 = vld [vmem:[%s1326 + $0x8] sm:$0xf]
  %v1330 = vld [vmem:[%s1326 + $0xc] sm:$0xf]
  %v1335 = vunpack.c.l.b16 %v1327
  %v1336 = vunpack.c.l.b16 %v1328
  %v1337 = vunpack.c.l.b16 %v1329
  %v1338 = vunpack.c.l.b16 %v1330
  %v1339 = vpack.c.b16 %v1336, %v1335
  %v1340 = vpack.c.b16 %v1338, %v1337
  %v1344 = vsel %vm427, %v1325, 0
  %1346 = vmatprep.subr.bf16.mxu0 0
  %1347 = vmatpush1.bf16.msra.mxu0 %v1339
  %1348 = vmatprep.subr.bf16.mxu0 0
  %1349 = vmatpush1.bf16.msra.mxu0 %v1340
  %1350 = vmatprep.subr.bf16.mxu0 0
  %1351 = vmatpush1.bf16.msra.mxu0 0
  %1352 = vmatprep.subr.bf16.mxu0 0
  %1353 = vmatpush1.bf16.msra.mxu0 0
  %1354 = vmatprep.subr.bf16.mxu0 0
  %1355 = vmatpush1.bf16.msra.mxu0 0
  %1356 = vmatprep.subr.bf16.mxu0 0
  %1357 = vmatpush1.bf16.msra.mxu0 0
  %1358 = vmatprep.subr.bf16.mxu0 0
  %1359 = vmatpush1.bf16.msra.mxu0 0
  %1360 = vmatprep.subr.bf16.mxu0 0
  %1361 = vmatpush1.bf16.msra.mxu0 0
  %1362 = vmatprep.subr.bf16.mxu0 0
  %1363 = vmatpush1.bf16.msra.mxu0 0
  %1364 = vmatprep.subr.bf16.mxu0 0
  %1365 = vmatpush1.bf16.msra.mxu0 0
  %1366 = vmatprep.subr.bf16.mxu0 0
  %1367 = vmatpush1.bf16.msra.mxu0 0
  %1368 = vmatprep.subr.bf16.mxu0 0
  %1369 = vmatpush1.bf16.msra.mxu0 0
  %1370 = vmatprep.subr.bf16.mxu0 0
  %1371 = vmatpush1.bf16.msra.mxu0 0
  %1372 = vmatprep.subr.bf16.mxu0 0
  %1373 = vmatpush1.bf16.msra.mxu0 0
  %1374 = vmatprep.subr.bf16.mxu0 0
  %1375 = vmatpush1.bf16.msra.mxu0 0
  %1376 = vmatprep.subr.bf16.mxu0 0
  %1377 = vmatpush1.bf16.msra.mxu0 0
  %1378 = vmatprep.mubr.bf16.mxu0 0
  %1379 = vmatmul.mubr.bf16.gmra.mrb[0].mxu0 %v1344
  %v1380 = vpop.f32.mrb[0].mxu0
  %v1381 = vadd.f32 0.0, %v1380
  %v1382 = vpop.f32.mrb[0].mxu0
  %v1383 = vpop.f32.mrb[0].mxu0
  %v1384 = vpop.f32.mrb[0].mxu0
  %1385 = vdwg.mxu0
  %v1386 = vadd.f32 %v1322, %v1381
  %v1387 = vld [vmem:[%s4] sm:$0x1]
  %v1389 = vlaneseq
  %v1390 = vshrl.u32 %v1389, 7
  %v1391 = vsub.s32 0, %v1390
  %v1392 = vrot.slane %v1387, %v1391
  %v1394 = vadd.f32 %v1386, %v1392
  %v1395 = vxor.u32 %v1394, 2147483648
  %v1396 = vmul.f32 %v1395, 1.442695
  %v1397 = vpow.pop %v1396
  %v1398 = vadd.f32 %v1397, 1.0
  %v1399 = vrcp.pop %v1398
  %v1400 = vmul.f32 1.0, %v1399
  %1401 = vst [vmem:[%s5] sm:$0xff] 0.0
  %vm1402 = vcmask 254976
  %1403 = vst.msk [vmem:[%s5] sm:$0x3] %vm1402, %v1400
  // Predicated region
  $region22: #{convnet_forward.1} parent=0 // pred_check
    _
  $region23: #{convnet_forward.1} parent=0 // pred_check_branch
    %1405 = sbr.rel (0) target = $region25
  $region24: #{convnet_forward.1} parent=0 // pred_region
    _
  $region25: #{convnet_forward.1} parent=0 // pred_fallthru
    _
  // Predicated region
  $region26: #{convnet_forward.1} parent=0 // pred_check
    _
  $region27: #{convnet_forward.1} parent=0 // pred_check_branch
    %1407 = sbr.rel (0) target = $region29
  $region28: #{convnet_forward.1} parent=0 // pred_region
    _
  $region29: #{convnet_forward.1} parent=0 // pred_fallthru
    _

</llo_original>
